<compile_context>
chip_gen: v7x
topology: tpu7x:2x2x1
jax: 0.10.0
libtpu: 0.0.40
codegen_flags: <defaults>
</compile_context>

<pallas_src>
import math

import jax
import jax.numpy as jnp
from jax.experimental import pallas as pl
from jax.experimental.pallas import tpu as pltpu

# ---- model hyper-parameters (small, consistent with the module) ----
D_MODEL = 32
NHEAD = 4
DIM_FF = 64
EPS = 1e-5
BATCH = 2
SEQ = 8


def _layernorm(x, gamma, beta, eps):
    mean = jnp.mean(x, axis=-1, keepdims=True)
    var = jnp.mean((x - mean) ** 2, axis=-1, keepdims=True)
    return (x - mean) * jax.lax.rsqrt(var + eps) * gamma + beta


def encoder_layer(x, params):
    B, S, D = x.shape
    H = NHEAD
    dh = D // H
    FD = DIM_FF
    scale = 1.0 / math.sqrt(dh)

    # -------- wrapper-side parameter packing (would be precomputed in a real
    # model; it is plain XLA work outside the kernel) --------
    # slab_a: (D+8, 4D) = (40, 128), one lane-dense tile row + 8 vector rows:
    #   rows 0:32  -> [ head-major fused QKV weight (96 lanes) | wo (32 lanes) ]
    #   row  32    -> head-major fused QKV bias (96 lanes)
    #   rows 33:40 -> bo, ln1_g, ln1_b, b1(64), b2, ln2_g, ln2_b (zero padded)
    qkv_w_cols, qkv_b_cols = [], []
    for h in range(H):
        sl = slice(h * dh, (h + 1) * dh)
        qkv_w_cols += [params["wq"][:, sl], params["wk"][:, sl], params["wv"][:, sl]]
        qkv_b_cols += [params["bq"][:, sl], params["bk"][:, sl], params["bv"][:, sl]]
    w_qkv_hm = jnp.concatenate(qkv_w_cols, axis=1)               # (D, 3D) head-major
    b_qkv_hm = jnp.concatenate(qkv_b_cols, axis=1)               # (1, 3D)
    w_rows = jnp.concatenate([w_qkv_hm, params["wo"]], axis=1)   # (D, 4D)

    def vec_row(v):
        v = v.reshape(1, -1)
        return jnp.pad(v, ((0, 0), (0, 4 * D - v.shape[1])))

    vec_rows = jnp.concatenate(
        [vec_row(b_qkv_hm), vec_row(params["bo"]),
         vec_row(params["ln1_g"]), vec_row(params["ln1_b"]),
         vec_row(params["b1"]), vec_row(params["b2"]),
         vec_row(params["ln2_g"]), vec_row(params["ln2_b"])], axis=0)   # (8, 4D)
    slab_a = jnp.concatenate([w_rows, vec_rows], axis=0)                # (40, 128)

    # slab_b: (D+FD, FD) = (96, 64): rows 0:32 = w1, rows 32:96 = w2 lane-padded
    w2p = jnp.pad(params["w2"], ((0, 0), (0, FD - params["w2"].shape[1])))
    slab_b = jnp.concatenate([params["w1"], w2p], axis=0)               # (96, 64)

    x2d = x.reshape(B * S, D)

    def kernel(x_ref, wa_ref, wf_ref, o_ref):
        xx = x_ref[...]                       # (B*S, D)
        W = wa_ref[...]                       # (40, 128)
        Fw = wf_ref[...]                      # (96, 64)

        # static slices of the packed slabs (free)
        w_qkv = W[0:D, 0:3 * D]               # (32, 96) head-major
        wo = W[0:D, 3 * D:4 * D]              # (32, 32)
        b_qkv = W[D:D + 1, 0:3 * D]           # (1, 96)
        bo = W[D + 1:D + 2, 0:D]
        g1 = W[D + 2:D + 3, 0:D]
        be1 = W[D + 3:D + 4, 0:D]
        b1 = W[D + 4:D + 5, 0:FD]
        b2 = W[D + 5:D + 6, 0:D]
        g2 = W[D + 6:D + 7, 0:D]
        be2 = W[D + 7:D + 8, 0:D]
        w1 = Fw[0:D, :]                       # (32, 64)
        w2 = Fw[D:D + FD, 0:D]                # (64, 32)

        # ---- self-attention block: single fused QKV matmul, batched heads ----
        qkv = jnp.dot(xx, w_qkv, preferred_element_type=jnp.float32) + b_qkv  # (B*S, 3D)

        # head-major lanes -> (H*B, S, 3*dh) using only leading-dim reshapes
        parts = [qkv[:, h * 3 * dh:(h + 1) * 3 * dh].reshape(B, S, 3 * dh)
                 for h in range(H)]
        qkvh = jnp.concatenate(parts, axis=0)          # (H*B, S, 3*dh)
        qh = qkvh[:, :, 0:dh]
        kh = qkvh[:, :, dh:2 * dh]
        vh = qkvh[:, :, 2 * dh:3 * dh]

        s = jnp.einsum("gqd,gkd->gqk", qh, kh,
                       preferred_element_type=jnp.float32) * scale     # (H*B,S,S)
        s = s - jnp.max(s, axis=-1, keepdims=True)
        p = jnp.exp(s)
        p = p * pl.reciprocal(jnp.sum(p, axis=-1, keepdims=True), approx=True)
        ctx = jnp.einsum("gqk,gkd->gqd", p, vh,
                         preferred_element_type=jnp.float32)           # (H*B,S,dh)

        # merge heads back to (B*S, D) in standard [h0|h1|h2|h3] lane order
        attn = jnp.concatenate(
            [ctx[h * B:(h + 1) * B].reshape(B * S, dh) for h in range(H)], axis=1)
        attn = jnp.dot(attn, wo, preferred_element_type=jnp.float32) + bo

        # dropout1 -> identity (eval).  Post-norm: norm1(x + sa_block(x))
        y = _layernorm(xx + attn, g1, be1, EPS)

        # ---- feed-forward block ----
        h1 = jnp.maximum(jnp.dot(y, w1, preferred_element_type=jnp.float32) + b1, 0.0)
        ff = jnp.dot(h1, w2, preferred_element_type=jnp.float32) + b2

        # dropout / dropout2 -> identity (eval).  norm2(y + ff_block(y))
        z = _layernorm(y + ff, g2, be2, EPS)
        o_ref[...] = z.astype(o_ref.dtype)

    out2d = pl.pallas_call(
        kernel,
        out_shape=jax.ShapeDtypeStruct((B * S, D), x.dtype),
        in_specs=[pl.BlockSpec(memory_space=pltpu.MemorySpace.VMEM)] * 3,
        out_specs=pl.BlockSpec(memory_space=pltpu.MemorySpace.VMEM),
    )(x2d, slab_a, slab_b)
    return out2d.reshape(B, S, D)


# ---------------- pure-JAX reference (for correctness check) ----------------
def reference(x, params):
    def ln(v, g, b):
        m = jnp.mean(v, axis=-1, keepdims=True)
        var = jnp.mean((v - m) ** 2, axis=-1, keepdims=True)
        return (v - m) / jnp.sqrt(var + EPS) * g + b

    q = x @ params["wq"] + params["bq"]
    k = x @ params["wk"] + params["bk"]
    v = x @ params["wv"] + params["bv"]
    B, S, D = x.shape
    dh = D // NHEAD
    qh = q.reshape(B, S, NHEAD, dh).transpose(0, 2, 1, 3)
    kh = k.reshape(B, S, NHEAD, dh).transpose(0, 2, 1, 3)
    vh = v.reshape(B, S, NHEAD, dh).transpose(0, 2, 1, 3)
    s = jnp.einsum("bhqd,bhkd->bhqk", qh, kh) / math.sqrt(dh)
    p = jax.nn.softmax(s, axis=-1)
    o = jnp.einsum("bhqk,bhkd->bhqd", p, vh).transpose(0, 2, 1, 3).reshape(B, S, D)
    attn = o @ params["wo"] + params["bo"]
    y = ln(x + attn, params["ln1_g"], params["ln1_b"])
    h1 = jnp.maximum(y @ params["w1"] + params["b1"], 0.0)
    ff = h1 @ params["w2"] + params["b2"]
    return ln(y + ff, params["ln2_g"], params["ln2_b"])


def make_params(key):
    ks = jax.random.split(key, 8)

    def w(k, shape):
        return (jax.random.normal(k, shape, jnp.float32) * 0.05).astype(jnp.float32)

    return {
        "wq": w(ks[0], (D_MODEL, D_MODEL)), "bq": w(ks[1], (1, D_MODEL)),
        "wk": w(ks[2], (D_MODEL, D_MODEL)), "bk": w(ks[3], (1, D_MODEL)),
        "wv": w(ks[4], (D_MODEL, D_MODEL)), "bv": w(ks[5], (1, D_MODEL)),
        "wo": w(ks[6], (D_MODEL, D_MODEL)), "bo": jnp.zeros((1, D_MODEL), jnp.float32),
        "ln1_g": jnp.ones((1, D_MODEL), jnp.float32),
        "ln1_b": jnp.zeros((1, D_MODEL), jnp.float32),
        "w1": w(ks[7], (D_MODEL, DIM_FF)),
        "b1": jnp.zeros((1, DIM_FF), jnp.float32),
        "w2": w(jax.random.PRNGKey(123), (DIM_FF, D_MODEL)),
        "b2": jnp.zeros((1, D_MODEL), jnp.float32),
        "ln2_g": jnp.ones((1, D_MODEL), jnp.float32),
        "ln2_b": jnp.zeros((1, D_MODEL), jnp.float32),
    }


if __name__ == "__main__":
    key = jax.random.PRNGKey(0)
    kx, kp = jax.random.split(key)
    x = jax.random.normal(kx, (BATCH, SEQ, D_MODEL), jnp.float32)
    params = make_params(kp)

    out = jax.block_until_ready(encoder_layer(x, params))
    ref = reference(x, params)

    assert out.shape == (BATCH, SEQ, D_MODEL)
    # tolerance slightly loosened vs exact f32 to cover the EUP approximate
    # reciprocal used for the softmax normalization (still far below any
    # real-bug error scale).
    assert jnp.allclose(out, ref, rtol=5e-3, atol=5e-3), (
        f"max err {jnp.max(jnp.abs(out - ref))}"
    )
    print("KERNEL_OK")
</pallas_src>

<mosaic_0001>
module attributes {stable_mosaic.version = 11 : i64} {
  func.func @kernel(%arg0: memref<16x32xf32, #tpu.memory_space<vmem>>, %arg1: memref<40x128xf32, #tpu.memory_space<vmem>>, %arg2: memref<96x64xf32, #tpu.memory_space<vmem>>, %arg3: memref<16x32xf32, #tpu.memory_space<vmem>>) attributes {dimension_semantics = [], scalar_prefetch = 0 : i64, scratch_operands = 0 : i64, tpu.core_type = #tpu.core_type<tc>} {
    %c0 = arith.constant 0 : index
    %c0_0 = arith.constant 0 : index
    %0 = vector.load %arg0[%c0, %c0_0] : memref<16x32xf32, #tpu.memory_space<vmem>>, vector<16x32xf32>
    %c0_1 = arith.constant 0 : index
    %c0_2 = arith.constant 0 : index
    %1 = vector.load %arg1[%c0_1, %c0_2] : memref<40x128xf32, #tpu.memory_space<vmem>>, vector<40x128xf32>
    %c0_3 = arith.constant 0 : index
    %c0_4 = arith.constant 0 : index
    %2 = vector.load %arg2[%c0_3, %c0_4] : memref<96x64xf32, #tpu.memory_space<vmem>>, vector<96x64xf32>
    %3 = vector.extract_strided_slice %1 {offsets = [0, 0], sizes = [32, 96], strides = [1, 1]} : vector<40x128xf32> to vector<32x96xf32>
    %4 = vector.extract_strided_slice %1 {offsets = [0, 96], sizes = [32, 32], strides = [1, 1]} : vector<40x128xf32> to vector<32x32xf32>
    %5 = vector.extract_strided_slice %1 {offsets = [32, 0], sizes = [1, 96], strides = [1, 1]} : vector<40x128xf32> to vector<1x96xf32>
    %6 = vector.extract_strided_slice %1 {offsets = [33, 0], sizes = [1, 32], strides = [1, 1]} : vector<40x128xf32> to vector<1x32xf32>
    %7 = vector.extract_strided_slice %1 {offsets = [34, 0], sizes = [1, 32], strides = [1, 1]} : vector<40x128xf32> to vector<1x32xf32>
    %8 = vector.extract_strided_slice %1 {offsets = [35, 0], sizes = [1, 32], strides = [1, 1]} : vector<40x128xf32> to vector<1x32xf32>
    %9 = vector.extract_strided_slice %1 {offsets = [36, 0], sizes = [1, 64], strides = [1, 1]} : vector<40x128xf32> to vector<1x64xf32>
    %10 = vector.extract_strided_slice %1 {offsets = [37, 0], sizes = [1, 32], strides = [1, 1]} : vector<40x128xf32> to vector<1x32xf32>
    %11 = vector.extract_strided_slice %1 {offsets = [38, 0], sizes = [1, 32], strides = [1, 1]} : vector<40x128xf32> to vector<1x32xf32>
    %12 = vector.extract_strided_slice %1 {offsets = [39, 0], sizes = [1, 32], strides = [1, 1]} : vector<40x128xf32> to vector<1x32xf32>
    %13 = vector.extract_strided_slice %2 {offsets = [0, 0], sizes = [32, 64], strides = [1, 1]} : vector<96x64xf32> to vector<32x64xf32>
    %14 = vector.extract_strided_slice %2 {offsets = [32, 0], sizes = [64, 32], strides = [1, 1]} : vector<96x64xf32> to vector<64x32xf32>
    %cst = arith.constant dense<0.000000e+00> : vector<16x96xf32>
    %15 = tpu.matmul %0, %3, %cst {dimension_numbers = #tpu.dot_dimension_numbers<[1], [0], [0], [1], [0, 0, 1, 1], [], []>} : vector<16x32xf32>, vector<32x96xf32>, vector<16x96xf32> -> vector<16x96xf32>
    %16 = vector.broadcast %5 : vector<1x96xf32> to vector<16x96xf32>
    %17 = arith.addf %15, %16 : vector<16x96xf32>
    %18 = vector.extract_strided_slice %17 {offsets = [0, 0], sizes = [16, 24], strides = [1, 1]} : vector<16x96xf32> to vector<16x24xf32>
    %19 = vector.shape_cast %18 : vector<16x24xf32> to vector<2x8x24xf32>
    %20 = vector.extract_strided_slice %17 {offsets = [0, 24], sizes = [16, 24], strides = [1, 1]} : vector<16x96xf32> to vector<16x24xf32>
    %21 = vector.shape_cast %20 : vector<16x24xf32> to vector<2x8x24xf32>
    %22 = vector.extract_strided_slice %17 {offsets = [0, 48], sizes = [16, 24], strides = [1, 1]} : vector<16x96xf32> to vector<16x24xf32>
    %23 = vector.shape_cast %22 : vector<16x24xf32> to vector<2x8x24xf32>
    %24 = vector.extract_strided_slice %17 {offsets = [0, 72], sizes = [16, 24], strides = [1, 1]} : vector<16x96xf32> to vector<16x24xf32>
    %25 = vector.shape_cast %24 : vector<16x24xf32> to vector<2x8x24xf32>
    %26 = tpu.concatenate %19, %21, %23, %25 in 0 : vector<2x8x24xf32>, vector<2x8x24xf32>, vector<2x8x24xf32>, vector<2x8x24xf32> -> vector<8x8x24xf32>
    %27 = vector.extract_strided_slice %26 {offsets = [0, 0, 0], sizes = [8, 8, 8], strides = [1, 1, 1]} : vector<8x8x24xf32> to vector<8x8x8xf32>
    %28 = vector.extract_strided_slice %26 {offsets = [0, 0, 8], sizes = [8, 8, 8], strides = [1, 1, 1]} : vector<8x8x24xf32> to vector<8x8x8xf32>
    %29 = vector.extract_strided_slice %26 {offsets = [0, 0, 16], sizes = [8, 8, 8], strides = [1, 1, 1]} : vector<8x8x24xf32> to vector<8x8x8xf32>
    "tpu.trace_start"() <{level = 10 : i32, message = "gqd,gkd->gqk"}> : () -> ()
    %cst_5 = arith.constant dense<0.000000e+00> : vector<8x8x8xf32>
    %30 = tpu.matmul %27, %28, %cst_5 {dimension_numbers = #tpu.dot_dimension_numbers<[2], [2], [1], [1], [0, 0, 0, 1, 1, 1], [0], [0]>} : vector<8x8x8xf32>, vector<8x8x8xf32>, vector<8x8x8xf32> -> vector<8x8x8xf32>
    "tpu.trace_stop"() : () -> ()
    %cst_6 = arith.constant 0.353553385 : f32
    %31 = vector.broadcast %cst_6 : f32 to vector<8x8x8xf32>
    %32 = arith.mulf %30, %31 : vector<8x8x8xf32>
    %cst_7 = arith.constant dense<0xFF800000> : vector<8x8xf32>
    %33 = vector.multi_reduction <maximumf>, %32, %cst_7 [2] : vector<8x8x8xf32> to vector<8x8xf32>
    %34 = vector.shape_cast %33 : vector<8x8xf32> to vector<8x8x1xf32>
    %35 = vector.broadcast %34 : vector<8x8x1xf32> to vector<8x8x8xf32>
    %36 = arith.subf %32, %35 : vector<8x8x8xf32>
    %37 = math.exp %36 : vector<8x8x8xf32>
    %cst_8 = arith.constant dense<0.000000e+00> : vector<8x8xf32>
    %38 = vector.multi_reduction <add>, %37, %cst_8 [2] : vector<8x8x8xf32> to vector<8x8xf32>
    %39 = vector.shape_cast %38 : vector<8x8xf32> to vector<8x8x1xf32>
    %40 = tpu.reciprocal %39 {approx = true} : vector<8x8x1xf32> -> vector<8x8x1xf32>
    %41 = vector.broadcast %40 : vector<8x8x1xf32> to vector<8x8x8xf32>
    %42 = arith.mulf %37, %41 : vector<8x8x8xf32>
    "tpu.trace_start"() <{level = 10 : i32, message = "gqk,gkd->gqd"}> : () -> ()
    %cst_9 = arith.constant dense<0.000000e+00> : vector<8x8x8xf32>
    %43 = tpu.matmul %42, %29, %cst_9 {dimension_numbers = #tpu.dot_dimension_numbers<[2], [1], [1], [2], [0, 0, 0, 1, 1, 2], [0], [0]>} : vector<8x8x8xf32>, vector<8x8x8xf32>, vector<8x8x8xf32> -> vector<8x8x8xf32>
    "tpu.trace_stop"() : () -> ()
    %44 = vector.extract_strided_slice %43 {offsets = [0, 0, 0], sizes = [2, 8, 8], strides = [1, 1, 1]} : vector<8x8x8xf32> to vector<2x8x8xf32>
    %45 = vector.shape_cast %44 : vector<2x8x8xf32> to vector<16x8xf32>
    %46 = vector.extract_strided_slice %43 {offsets = [2, 0, 0], sizes = [2, 8, 8], strides = [1, 1, 1]} : vector<8x8x8xf32> to vector<2x8x8xf32>
    %47 = vector.shape_cast %46 : vector<2x8x8xf32> to vector<16x8xf32>
    %48 = vector.extract_strided_slice %43 {offsets = [4, 0, 0], sizes = [2, 8, 8], strides = [1, 1, 1]} : vector<8x8x8xf32> to vector<2x8x8xf32>
    %49 = vector.shape_cast %48 : vector<2x8x8xf32> to vector<16x8xf32>
    %50 = vector.extract_strided_slice %43 {offsets = [6, 0, 0], sizes = [2, 8, 8], strides = [1, 1, 1]} : vector<8x8x8xf32> to vector<2x8x8xf32>
    %51 = vector.shape_cast %50 : vector<2x8x8xf32> to vector<16x8xf32>
    %52 = tpu.concatenate %45, %47, %49, %51 in 1 : vector<16x8xf32>, vector<16x8xf32>, vector<16x8xf32>, vector<16x8xf32> -> vector<16x32xf32>
    %cst_10 = arith.constant dense<0.000000e+00> : vector<16x32xf32>
    %53 = tpu.matmul %52, %4, %cst_10 {dimension_numbers = #tpu.dot_dimension_numbers<[1], [0], [0], [1], [0, 0, 1, 1], [], []>} : vector<16x32xf32>, vector<32x32xf32>, vector<16x32xf32> -> vector<16x32xf32>
    %54 = vector.broadcast %6 : vector<1x32xf32> to vector<16x32xf32>
    %55 = arith.addf %53, %54 : vector<16x32xf32>
    %56 = arith.addf %0, %55 : vector<16x32xf32>
    %cst_11 = arith.constant dense<0.000000e+00> : vector<16xf32>
    %57 = vector.multi_reduction <add>, %56, %cst_11 [1] : vector<16x32xf32> to vector<16xf32>
    %58 = vector.shape_cast %57 : vector<16xf32> to vector<16x1xf32>
    %cst_12 = arith.constant 3.200000e+01 : f32
    %59 = vector.broadcast %cst_12 : f32 to vector<16x1xf32>
    %60 = arith.divf %58, %59 : vector<16x1xf32>
    %61 = vector.broadcast %60 : vector<16x1xf32> to vector<16x32xf32>
    %62 = arith.subf %56, %61 : vector<16x32xf32>
    %63 = arith.mulf %62, %62 : vector<16x32xf32>
    %cst_13 = arith.constant dense<0.000000e+00> : vector<16xf32>
    %64 = vector.multi_reduction <add>, %63, %cst_13 [1] : vector<16x32xf32> to vector<16xf32>
    %65 = vector.shape_cast %64 : vector<16xf32> to vector<16x1xf32>
    %cst_14 = arith.constant 3.200000e+01 : f32
    %66 = vector.broadcast %cst_14 : f32 to vector<16x1xf32>
    %67 = arith.divf %65, %66 : vector<16x1xf32>
    %68 = vector.broadcast %60 : vector<16x1xf32> to vector<16x32xf32>
    %69 = arith.subf %56, %68 : vector<16x32xf32>
    %cst_15 = arith.constant 9.99999974E-6 : f32
    %70 = vector.broadcast %cst_15 : f32 to vector<16x1xf32>
    %71 = arith.addf %67, %70 : vector<16x1xf32>
    %72 = math.rsqrt %71 : vector<16x1xf32>
    %73 = vector.broadcast %72 : vector<16x1xf32> to vector<16x32xf32>
    %74 = arith.mulf %69, %73 : vector<16x32xf32>
    %75 = vector.broadcast %7 : vector<1x32xf32> to vector<16x32xf32>
    %76 = arith.mulf %74, %75 : vector<16x32xf32>
    %77 = vector.broadcast %8 : vector<1x32xf32> to vector<16x32xf32>
    %78 = arith.addf %76, %77 : vector<16x32xf32>
    %cst_16 = arith.constant dense<0.000000e+00> : vector<16x64xf32>
    %79 = tpu.matmul %78, %13, %cst_16 {dimension_numbers = #tpu.dot_dimension_numbers<[1], [0], [0], [1], [0, 0, 1, 1], [], []>} : vector<16x32xf32>, vector<32x64xf32>, vector<16x64xf32> -> vector<16x64xf32>
    %80 = vector.broadcast %9 : vector<1x64xf32> to vector<16x64xf32>
    %81 = arith.addf %79, %80 : vector<16x64xf32>
    %cst_17 = arith.constant 0.000000e+00 : f32
    %82 = vector.broadcast %cst_17 : f32 to vector<16x64xf32>
    %83 = arith.maximumf %81, %82 : vector<16x64xf32>
    %cst_18 = arith.constant dense<0.000000e+00> : vector<16x32xf32>
    %84 = tpu.matmul %83, %14, %cst_18 {dimension_numbers = #tpu.dot_dimension_numbers<[1], [0], [0], [1], [0, 0, 1, 1], [], []>} : vector<16x64xf32>, vector<64x32xf32>, vector<16x32xf32> -> vector<16x32xf32>
    %85 = vector.broadcast %10 : vector<1x32xf32> to vector<16x32xf32>
    %86 = arith.addf %84, %85 : vector<16x32xf32>
    %87 = arith.addf %78, %86 : vector<16x32xf32>
    %cst_19 = arith.constant dense<0.000000e+00> : vector<16xf32>
    %88 = vector.multi_reduction <add>, %87, %cst_19 [1] : vector<16x32xf32> to vector<16xf32>
    %89 = vector.shape_cast %88 : vector<16xf32> to vector<16x1xf32>
    %cst_20 = arith.constant 3.200000e+01 : f32
    %90 = vector.broadcast %cst_20 : f32 to vector<16x1xf32>
    %91 = arith.divf %89, %90 : vector<16x1xf32>
    %92 = vector.broadcast %91 : vector<16x1xf32> to vector<16x32xf32>
    %93 = arith.subf %87, %92 : vector<16x32xf32>
    %94 = arith.mulf %93, %93 : vector<16x32xf32>
    %cst_21 = arith.constant dense<0.000000e+00> : vector<16xf32>
    %95 = vector.multi_reduction <add>, %94, %cst_21 [1] : vector<16x32xf32> to vector<16xf32>
    %96 = vector.shape_cast %95 : vector<16xf32> to vector<16x1xf32>
    %cst_22 = arith.constant 3.200000e+01 : f32
    %97 = vector.broadcast %cst_22 : f32 to vector<16x1xf32>
    %98 = arith.divf %96, %97 : vector<16x1xf32>
    %99 = vector.broadcast %91 : vector<16x1xf32> to vector<16x32xf32>
    %100 = arith.subf %87, %99 : vector<16x32xf32>
    %cst_23 = arith.constant 9.99999974E-6 : f32
    %101 = vector.broadcast %cst_23 : f32 to vector<16x1xf32>
    %102 = arith.addf %98, %101 : vector<16x1xf32>
    %103 = math.rsqrt %102 : vector<16x1xf32>
    %104 = vector.broadcast %103 : vector<16x1xf32> to vector<16x32xf32>
    %105 = arith.mulf %100, %104 : vector<16x32xf32>
    %106 = vector.broadcast %11 : vector<1x32xf32> to vector<16x32xf32>
    %107 = arith.mulf %105, %106 : vector<16x32xf32>
    %108 = vector.broadcast %12 : vector<1x32xf32> to vector<16x32xf32>
    %109 = arith.addf %107, %108 : vector<16x32xf32>
    %c0_24 = arith.constant 0 : index
    %c0_25 = arith.constant 0 : index
    %110 = vector.load %arg3[%c0_24, %c0_25] : memref<16x32xf32, #tpu.memory_space<vmem>>, vector<16x32xf32>
    tpu.vector_store %arg3[%c0_24, %c0_25], %109 {strides = array<i32>} : memref<16x32xf32, #tpu.memory_space<vmem>>, vector<16x32xf32>,
    return
  }
}

</mosaic_0001>

<llo_original>
// kernel: tpu_custom_call.1
$region0: #{tpu_custom_call.1}
  #allocation0 [shape = 'u32[]', space=smem, size = 0x4, offset = 0x4, fixed_abs, tag = 'smem constant byte address 0x4 - core index']
  #allocation1 [shape = 'u32[144,128]{1,0:T(1,128)}', space=vmem, size = 0x12000, scoped, tag = 'internal scratch']
  %s0 = inlined_call_operand.vmem [shape: f32[16,32], index: 0, kind: input, shape index: {}]
  %s1 = inlined_call_operand.vmem [shape: f32[40,128], index: 1, kind: input, shape index: {}]
  %s2 = inlined_call_operand.vmem [shape: f32[96,64], index: 2, kind: input, shape index: {}]
  %s3 = inlined_call_operand.hbm [shape: f32[16,32], index: 3, kind: output, shape index: {}]
  %s4 = sld [smem:[#allocation0]]
  $region22: #{tpu_custom_call.1} parent=0
    _
  %s6 = ssub.s32 1, %s4
  %s7 = scalar_select 0, %s6, %s4
  $region1: #{tpu_custom_call.1} parent=0
    #allocation2 [shape = 'u8[8192]{0}', space=vmem, size = 0x2000, scoped, tag = 'output window, operand 0, single buffered']
    #allocation3 [shape = 's32[1]{0}', space=sflag, size = 0x4, scoped, tag = 'scoped memory for tpu_custom_call.1']
    %8 = vsyncpa [#allocation3], 0
    // Predicated region
    $region2: #{tpu_custom_call.1} parent=1 // pred_check
      _
    $region3: #{tpu_custom_call.1} parent=1 // pred_check_branch
      %10 = sbr.rel (0) target = $region5
    $region4: #{tpu_custom_call.1} parent=1 // pred_region
      _
    $region5: #{tpu_custom_call.1} parent=1 // pred_fallthru
      _
    // Predicated region
    $region6: #{tpu_custom_call.1} parent=1 // pred_check
      _
    $region7: #{tpu_custom_call.1} parent=1 // pred_check_branch
      %12 = sbr.rel (0) target = $region9
    $region8: #{tpu_custom_call.1} parent=1 // pred_region
      _
    $region9: #{tpu_custom_call.1} parent=1 // pred_fallthru
      _
    // Predicated region
    $region10: #{tpu_custom_call.1} parent=1 // pred_check
      _
    $region11: #{tpu_custom_call.1} parent=1 // pred_check_branch
      %14 = sbr.rel (0) target = $region13
    $region12: #{tpu_custom_call.1} parent=1 // pred_region
      _
    $region13: #{tpu_custom_call.1} parent=1 // pred_fallthru
      _
    %v15 = vld [vmem:[%s0] sm:$0xff]
    %v16 = vld [vmem:[%s0 + $0x8] sm:$0xff]
    %v17 = vld [vmem:[%s1] sm:$0xff]
    %v18 = vld [vmem:[%s1 + $0x8] sm:$0xff]
    %v19 = vld [vmem:[%s1 + $0x10] sm:$0xff]
    %v20 = vld [vmem:[%s1 + $0x18] sm:$0xff]
    %v21 = vld [vmem:[%s1 + $0x20] sm:$0xff]
    %v22 = vld [vmem:[%s2] sm:$0xff]
    %v23 = vld [vmem:[%s2 + $0x8] sm:$0xff]
    %v24 = vld [vmem:[%s2 + $0x10] sm:$0xff]
    %v25 = vld [vmem:[%s2 + $0x18] sm:$0xff]
    %v26 = vld [vmem:[%s2 + $0x20] sm:$0xff]
    %v27 = vld [vmem:[%s2 + $0x28] sm:$0xff]
    %v28 = vld [vmem:[%s2 + $0x30] sm:$0xff]
    %v29 = vld [vmem:[%s2 + $0x38] sm:$0xff]
    %v30 = vld [vmem:[%s2 + $0x40] sm:$0xff]
    %v31 = vld [vmem:[%s2 + $0x48] sm:$0xff]
    %v32 = vld [vmem:[%s2 + $0x50] sm:$0xff]
    %v33 = vld [vmem:[%s2 + $0x58] sm:$0xff]
    %v34 = vlaneseq
    %v35 = vshrl.u32 %v34, 7
    %v36 = vsub.s32 0, %v35
    %v37 = vrot.slane %v21, %v36
    %vm38 = vcmask 261120
    %v40 = vsel %vm38, %v15, 0
    %v43 = vsel %vm38, %v16, 0
    %45 = vmatprep.subr.mxu0 0.0
    %46 = vmatpush1.msra.mxu0 %v17
    %47 = vmatprep.subr.mxu0 0.0
    %48 = vmatpush1.msra.mxu0 %v18
    %49 = vmatprep.subr.mxu0 0.0
    %50 = vmatpush1.msra.mxu0 %v19
    %51 = vmatprep.subr.mxu0 0.0
    %52 = vmatpush1.msra.mxu0 %v20
    %53 = vmatprep.subr.mxu0 0.0
    %54 = vmatpush1.msra.mxu0 0.0
    %55 = vmatprep.subr.mxu0 0.0
    %56 = vmatpush1.msra.mxu0 0.0
    %57 = vmatprep.subr.mxu0 0.0
    %58 = vmatpush1.msra.mxu0 0.0
    %59 = vmatprep.subr.mxu0 0.0
    %60 = vmatpush1.msra.mxu0 0.0
    %61 = vmatprep.subr.mxu0 0.0
    %62 = vmatpush1.msra.mxu0 0.0
    %63 = vmatprep.subr.mxu0 0.0
    %64 = vmatpush1.msra.mxu0 0.0
    %65 = vmatprep.subr.mxu0 0.0
    %66 = vmatpush1.msra.mxu0 0.0
    %67 = vmatprep.subr.mxu0 0.0
    %68 = vmatpush1.msra.mxu0 0.0
    %69 = vmatprep.subr.mxu0 0.0
    %70 = vmatpush1.msra.mxu0 0.0
    %71 = vmatprep.subr.mxu0 0.0
    %72 = vmatpush1.msra.mxu0 0.0
    %73 = vmatprep.subr.mxu0 0.0
    %74 = vmatpush1.msra.mxu0 0.0
    %75 = vmatprep.subr.mxu0 0.0
    %76 = vmatpush1.msra.mxu0 0.0
    %77 = vmatprep.subr.mxu0 0.0
    %78 = vmatpush1.msra.mxu0 0.0
    %79 = vmatprep.subr.mxu0 0.0
    %80 = vmatpush1.msra.mxu0 0.0
    %81 = vmatprep.subr.mxu0 0.0
    %82 = vmatpush1.msra.mxu0 0.0
    %83 = vmatprep.subr.mxu0 0.0
    %84 = vmatpush1.msra.mxu0 0.0
    %85 = vmatprep.subr.mxu0 0.0
    %86 = vmatpush1.msra.mxu0 0.0
    %87 = vmatprep.subr.mxu0 0.0
    %88 = vmatpush1.msra.mxu0 0.0
    %89 = vmatprep.subr.mxu0 0.0
    %90 = vmatpush1.msra.mxu0 0.0
    %91 = vmatprep.subr.mxu0 0.0
    %92 = vmatpush1.msra.mxu0 0.0
    %93 = vmatprep.subr.mxu0 0.0
    %94 = vmatpush1.msra.mxu0 0.0
    %95 = vmatprep.subr.mxu0 0.0
    %96 = vmatpush1.msra.mxu0 0.0
    %97 = vmatprep.subr.mxu0 0.0
    %98 = vmatpush1.msra.mxu0 0.0
    %99 = vmatprep.subr.mxu0 0.0
    %100 = vmatpush1.msra.mxu0 0.0
    %101 = vmatprep.subr.mxu0 0.0
    %102 = vmatpush1.msra.mxu0 0.0
    %103 = vmatprep.subr.mxu0 0.0
    %104 = vmatpush1.msra.mxu0 0.0
    %105 = vmatprep.subr.mxu0 0.0
    %106 = vmatpush1.msra.mxu0 0.0
    %107 = vmatprep.subr.mxu0 0.0
    %108 = vmatpush1.msra.mxu0 0.0
    %109 = vmatprep.mubr.f32.mxu0 0.0
    %110 = vmatmul.mubr.f32.gmra.mrb[0].mxu0 %v40
    %v111 = vpop.f32.mrb[0].mxu0
    %v112 = vadd.f32 %v37, %v111
    %v113 = vpop.f32.mrb[0].mxu0
    %114 = vmatprep.mubr.f32.mxu0 0.0
    %115 = vmatmul.mubr.f32.gmra.mrb[0].mxu0 %v43
    %v116 = vpop.f32.mrb[0].mxu0
    %v117 = vadd.f32 %v37, %v116
    %v118 = vpop.f32.mrb[0].mxu0
    %119 = vdwg.mxu0
    %122 = vrot.lane.b32.xlu0 %v112, 104
    %v123 = vpop.permute.xlu0 %122
    %124 = vrot.lane.b32.xlu0 %v117, 104
    %v125 = vpop.permute.xlu0 %124
    %126 = vrot.lane.b32.xlu0 %v112, 80
    %v127 = vpop.permute.xlu0 %126
    %128 = vrot.lane.b32.xlu0 %v117, 80
    %v129 = vpop.permute.xlu0 %128
    %130 = vrot.lane.b32.xlu0 %v112, 56
    %v131 = vpop.permute.xlu0 %130
    %132 = vrot.lane.b32.xlu0 %v117, 56
    %v133 = vpop.permute.xlu0 %132
    %134 = vrot.lane.b32.xlu0 %v112, 120
    %v135 = vpop.permute.xlu0 %134
    %vm136 = vcmask 64512
    %v137 = vsel %vm136, %v112, 0
    %v139 = vsel %vm136, %v135, 0
    %141 = vmatprep.subr.mxu0 0.0
    %142 = vmatpush1.xpose.msra.mxu0 %v139
    %143 = vmatprep.subr.mxu0 0.0
    %144 = vmatpush1.xpose.msra.mxu0 0.0
    %145 = vmatprep.subr.mxu0 0.0
    %146 = vmatpush1.xpose.msra.mxu0 0.0
    %147 = vmatprep.subr.mxu0 0.0
    %148 = vmatpush1.xpose.msra.mxu0 0.0
    %149 = vmatprep.subr.mxu0 0.0
    %150 = vmatpush1.xpose.msra.mxu0 0.0
    %151 = vmatprep.subr.mxu0 0.0
    %152 = vmatpush1.xpose.msra.mxu0 0.0
    %153 = vmatprep.subr.mxu0 0.0
    %154 = vmatpush1.xpose.msra.mxu0 0.0
    %155 = vmatprep.subr.mxu0 0.0
    %156 = vmatpush1.xpose.msra.mxu0 0.0
    %157 = vmatprep.subr.mxu0 0.0
    %158 = vmatpush1.xpose.msra.mxu0 0.0
    %159 = vmatprep.subr.mxu0 0.0
    %160 = vmatpush1.xpose.msra.mxu0 0.0
    %161 = vmatprep.subr.mxu0 0.0
    %162 = vmatpush1.xpose.msra.mxu0 0.0
    %163 = vmatprep.subr.mxu0 0.0
    %164 = vmatpush1.xpose.msra.mxu0 0.0
    %165 = vmatprep.subr.mxu0 0.0
    %166 = vmatpush1.xpose.msra.mxu0 0.0
    %167 = vmatprep.subr.mxu0 0.0
    %168 = vmatpush1.xpose.msra.mxu0 0.0
    %169 = vmatprep.subr.mxu0 0.0
    %170 = vmatpush1.xpose.msra.mxu0 0.0
    %171 = vmatprep.subr.mxu0 0.0
    %172 = vmatpush1.xpose.msra.mxu0 0.0
    %173 = vmatprep.subr.mxu0 0.0
    %174 = vmatpush1.xpose.msra.mxu0 0.0
    %175 = vmatprep.subr.mxu0 0.0
    %176 = vmatpush1.xpose.msra.mxu0 0.0
    %177 = vmatprep.subr.mxu0 0.0
    %178 = vmatpush1.xpose.msra.mxu0 0.0
    %179 = vmatprep.subr.mxu0 0.0
    %180 = vmatpush1.xpose.msra.mxu0 0.0
    %181 = vmatprep.subr.mxu0 0.0
    %182 = vmatpush1.xpose.msra.mxu0 0.0
    %183 = vmatprep.subr.mxu0 0.0
    %184 = vmatpush1.xpose.msra.mxu0 0.0
    %185 = vmatprep.subr.mxu0 0.0
    %186 = vmatpush1.xpose.msra.mxu0 0.0
    %187 = vmatprep.subr.mxu0 0.0
    %188 = vmatpush1.xpose.msra.mxu0 0.0
    %189 = vmatprep.subr.mxu0 0.0
    %190 = vmatpush1.xpose.msra.mxu0 0.0
    %191 = vmatprep.subr.mxu0 0.0
    %192 = vmatpush1.xpose.msra.mxu0 0.0
    %193 = vmatprep.subr.mxu0 0.0
    %194 = vmatpush1.xpose.msra.mxu0 0.0
    %195 = vmatprep.subr.mxu0 0.0
    %196 = vmatpush1.xpose.msra.mxu0 0.0
    %197 = vmatprep.subr.mxu0 0.0
    %198 = vmatpush1.xpose.msra.mxu0 0.0
    %199 = vmatprep.subr.mxu0 0.0
    %200 = vmatpush1.xpose.msra.mxu0 0.0
    %201 = vmatprep.subr.mxu0 0.0
    %202 = vmatpush1.xpose.msra.mxu0 0.0
    %203 = vmatprep.subr.mxu0 0.0
    %204 = vmatpush1.xpose.msra.mxu0 0.0
    %205 = vmatprep.mubr.f32.mxu0 0.0
    %206 = vmatmul.mubr.f32.gmra.mrb[0].mxu0 %v137
    %v207 = vpop.f32.mrb[0].mxu0
    %v208 = vadd.f32 0.0, %v207
    %v209 = vpop.f32.mrb[0].mxu0
    %210 = vdwg.mxu0
    %211 = vrot.lane.b32.xlu0 %v117, 120
    %v212 = vpop.permute.xlu0 %211
    %v213 = vsel %vm136, %v117, 0
    %v215 = vsel %vm136, %v212, 0
    %217 = vmatprep.subr.mxu0 0.0
    %218 = vmatpush1.xpose.msra.mxu0 %v215
    %219 = vmatprep.subr.mxu0 0.0
    %220 = vmatpush1.xpose.msra.mxu0 0.0
    %221 = vmatprep.subr.mxu0 0.0
    %222 = vmatpush1.xpose.msra.mxu0 0.0
    %223 = vmatprep.subr.mxu0 0.0
    %224 = vmatpush1.xpose.msra.mxu0 0.0
    %225 = vmatprep.subr.mxu0 0.0
    %226 = vmatpush1.xpose.msra.mxu0 0.0
    %227 = vmatprep.subr.mxu0 0.0
    %228 = vmatpush1.xpose.msra.mxu0 0.0
    %229 = vmatprep.subr.mxu0 0.0
    %230 = vmatpush1.xpose.msra.mxu0 0.0
    %231 = vmatprep.subr.mxu0 0.0
    %232 = vmatpush1.xpose.msra.mxu0 0.0
    %233 = vmatprep.subr.mxu0 0.0
    %234 = vmatpush1.xpose.msra.mxu0 0.0
    %235 = vmatprep.subr.mxu0 0.0
    %236 = vmatpush1.xpose.msra.mxu0 0.0
    %237 = vmatprep.subr.mxu0 0.0
    %238 = vmatpush1.xpose.msra.mxu0 0.0
    %239 = vmatprep.subr.mxu0 0.0
    %240 = vmatpush1.xpose.msra.mxu0 0.0
    %241 = vmatprep.subr.mxu0 0.0
    %242 = vmatpush1.xpose.msra.mxu0 0.0
    %243 = vmatprep.subr.mxu0 0.0
    %244 = vmatpush1.xpose.msra.mxu0 0.0
    %245 = vmatprep.subr.mxu0 0.0
    %246 = vmatpush1.xpose.msra.mxu0 0.0
    %247 = vmatprep.subr.mxu0 0.0
    %248 = vmatpush1.xpose.msra.mxu0 0.0
    %249 = vmatprep.subr.mxu0 0.0
    %250 = vmatpush1.xpose.msra.mxu0 0.0
    %251 = vmatprep.subr.mxu0 0.0
    %252 = vmatpush1.xpose.msra.mxu0 0.0
    %253 = vmatprep.subr.mxu0 0.0
    %254 = vmatpush1.xpose.msra.mxu0 0.0
    %255 = vmatprep.subr.mxu0 0.0
    %256 = vmatpush1.xpose.msra.mxu0 0.0
    %257 = vmatprep.subr.mxu0 0.0
    %258 = vmatpush1.xpose.msra.mxu0 0.0
    %259 = vmatprep.subr.mxu0 0.0
    %260 = vmatpush1.xpose.msra.mxu0 0.0
    %261 = vmatprep.subr.mxu0 0.0
    %262 = vmatpush1.xpose.msra.mxu0 0.0
    %263 = vmatprep.subr.mxu0 0.0
    %264 = vmatpush1.xpose.msra.mxu0 0.0
    %265 = vmatprep.subr.mxu0 0.0
    %266 = vmatpush1.xpose.msra.mxu0 0.0
    %267 = vmatprep.subr.mxu0 0.0
    %268 = vmatpush1.xpose.msra.mxu0 0.0
    %269 = vmatprep.subr.mxu0 0.0
    %270 = vmatpush1.xpose.msra.mxu0 0.0
    %271 = vmatprep.subr.mxu0 0.0
    %272 = vmatpush1.xpose.msra.mxu0 0.0
    %273 = vmatprep.subr.mxu0 0.0
    %274 = vmatpush1.xpose.msra.mxu0 0.0
    %275 = vmatprep.subr.mxu0 0.0
    %276 = vmatpush1.xpose.msra.mxu0 0.0
    %277 = vmatprep.subr.mxu0 0.0
    %278 = vmatpush1.xpose.msra.mxu0 0.0
    %279 = vmatprep.subr.mxu0 0.0
    %280 = vmatpush1.xpose.msra.mxu0 0.0
    %281 = vmatprep.mubr.f32.mxu0 0.0
    %282 = vmatmul.mubr.f32.gmra.mrb[0].mxu0 %v213
    %v283 = vpop.f32.mrb[0].mxu0
    %v284 = vadd.f32 0.0, %v283
    %v285 = vpop.f32.mrb[0].mxu0
    %286 = vdwg.mxu0
    %287 = vrot.lane.b32.xlu0 %v123, 120
    %v288 = vpop.permute.xlu0 %287
    %v289 = vsel %vm136, %v123, 0
    %v291 = vsel %vm136, %v288, 0
    %293 = vmatprep.subr.mxu0 0.0
    %294 = vmatpush1.xpose.msra.mxu0 %v291
    %295 = vmatprep.subr.mxu0 0.0
    %296 = vmatpush1.xpose.msra.mxu0 0.0
    %297 = vmatprep.subr.mxu0 0.0
    %298 = vmatpush1.xpose.msra.mxu0 0.0
    %299 = vmatprep.subr.mxu0 0.0
    %300 = vmatpush1.xpose.msra.mxu0 0.0
    %301 = vmatprep.subr.mxu0 0.0
    %302 = vmatpush1.xpose.msra.mxu0 0.0
    %303 = vmatprep.subr.mxu0 0.0
    %304 = vmatpush1.xpose.msra.mxu0 0.0
    %305 = vmatprep.subr.mxu0 0.0
    %306 = vmatpush1.xpose.msra.mxu0 0.0
    %307 = vmatprep.subr.mxu0 0.0
    %308 = vmatpush1.xpose.msra.mxu0 0.0
    %309 = vmatprep.subr.mxu0 0.0
    %310 = vmatpush1.xpose.msra.mxu0 0.0
    %311 = vmatprep.subr.mxu0 0.0
    %312 = vmatpush1.xpose.msra.mxu0 0.0
    %313 = vmatprep.subr.mxu0 0.0
    %314 = vmatpush1.xpose.msra.mxu0 0.0
    %315 = vmatprep.subr.mxu0 0.0
    %316 = vmatpush1.xpose.msra.mxu0 0.0
    %317 = vmatprep.subr.mxu0 0.0
    %318 = vmatpush1.xpose.msra.mxu0 0.0
    %319 = vmatprep.subr.mxu0 0.0
    %320 = vmatpush1.xpose.msra.mxu0 0.0
    %321 = vmatprep.subr.mxu0 0.0
    %322 = vmatpush1.xpose.msra.mxu0 0.0
    %323 = vmatprep.subr.mxu0 0.0
    %324 = vmatpush1.xpose.msra.mxu0 0.0
    %325 = vmatprep.subr.mxu0 0.0
    %326 = vmatpush1.xpose.msra.mxu0 0.0
    %327 = vmatprep.subr.mxu0 0.0
    %328 = vmatpush1.xpose.msra.mxu0 0.0
    %329 = vmatprep.subr.mxu0 0.0
    %330 = vmatpush1.xpose.msra.mxu0 0.0
    %331 = vmatprep.subr.mxu0 0.0
    %332 = vmatpush1.xpose.msra.mxu0 0.0
    %333 = vmatprep.subr.mxu0 0.0
    %334 = vmatpush1.xpose.msra.mxu0 0.0
    %335 = vmatprep.subr.mxu0 0.0
    %336 = vmatpush1.xpose.msra.mxu0 0.0
    %337 = vmatprep.subr.mxu0 0.0
    %338 = vmatpush1.xpose.msra.mxu0 0.0
    %339 = vmatprep.subr.mxu0 0.0
    %340 = vmatpush1.xpose.msra.mxu0 0.0
    %341 = vmatprep.subr.mxu0 0.0
    %342 = vmatpush1.xpose.msra.mxu0 0.0
    %343 = vmatprep.subr.mxu0 0.0
    %344 = vmatpush1.xpose.msra.mxu0 0.0
    %345 = vmatprep.subr.mxu0 0.0
    %346 = vmatpush1.xpose.msra.mxu0 0.0
    %347 = vmatprep.subr.mxu0 0.0
    %348 = vmatpush1.xpose.msra.mxu0 0.0
    %349 = vmatprep.subr.mxu0 0.0
    %350 = vmatpush1.xpose.msra.mxu0 0.0
    %351 = vmatprep.subr.mxu0 0.0
    %352 = vmatpush1.xpose.msra.mxu0 0.0
    %353 = vmatprep.subr.mxu0 0.0
    %354 = vmatpush1.xpose.msra.mxu0 0.0
    %355 = vmatprep.subr.mxu0 0.0
    %356 = vmatpush1.xpose.msra.mxu0 0.0
    %357 = vmatprep.mubr.f32.mxu0 0.0
    %358 = vmatmul.mubr.f32.gmra.mrb[0].mxu0 %v289
    %v359 = vpop.f32.mrb[0].mxu0
    %v360 = vadd.f32 0.0, %v359
    %v361 = vpop.f32.mrb[0].mxu0
    %362 = vdwg.mxu0
    %363 = vrot.lane.b32.xlu0 %v125, 120
    %v364 = vpop.permute.xlu0 %363
    %v365 = vsel %vm136, %v125, 0
    %v367 = vsel %vm136, %v364, 0
    %369 = vmatprep.subr.mxu0 0.0
    %370 = vmatpush1.xpose.msra.mxu0 %v367
    %371 = vmatprep.subr.mxu0 0.0
    %372 = vmatpush1.xpose.msra.mxu0 0.0
    %373 = vmatprep.subr.mxu0 0.0
    %374 = vmatpush1.xpose.msra.mxu0 0.0
    %375 = vmatprep.subr.mxu0 0.0
    %376 = vmatpush1.xpose.msra.mxu0 0.0
    %377 = vmatprep.subr.mxu0 0.0
    %378 = vmatpush1.xpose.msra.mxu0 0.0
    %379 = vmatprep.subr.mxu0 0.0
    %380 = vmatpush1.xpose.msra.mxu0 0.0
    %381 = vmatprep.subr.mxu0 0.0
    %382 = vmatpush1.xpose.msra.mxu0 0.0
    %383 = vmatprep.subr.mxu0 0.0
    %384 = vmatpush1.xpose.msra.mxu0 0.0
    %385 = vmatprep.subr.mxu0 0.0
    %386 = vmatpush1.xpose.msra.mxu0 0.0
    %387 = vmatprep.subr.mxu0 0.0
    %388 = vmatpush1.xpose.msra.mxu0 0.0
    %389 = vmatprep.subr.mxu0 0.0
    %390 = vmatpush1.xpose.msra.mxu0 0.0
    %391 = vmatprep.subr.mxu0 0.0
    %392 = vmatpush1.xpose.msra.mxu0 0.0
    %393 = vmatprep.subr.mxu0 0.0
    %394 = vmatpush1.xpose.msra.mxu0 0.0
    %395 = vmatprep.subr.mxu0 0.0
    %396 = vmatpush1.xpose.msra.mxu0 0.0
    %397 = vmatprep.subr.mxu0 0.0
    %398 = vmatpush1.xpose.msra.mxu0 0.0
    %399 = vmatprep.subr.mxu0 0.0
    %400 = vmatpush1.xpose.msra.mxu0 0.0
    %401 = vmatprep.subr.mxu0 0.0
    %402 = vmatpush1.xpose.msra.mxu0 0.0
    %403 = vmatprep.subr.mxu0 0.0
    %404 = vmatpush1.xpose.msra.mxu0 0.0
    %405 = vmatprep.subr.mxu0 0.0
    %406 = vmatpush1.xpose.msra.mxu0 0.0
    %407 = vmatprep.subr.mxu0 0.0
    %408 = vmatpush1.xpose.msra.mxu0 0.0
    %409 = vmatprep.subr.mxu0 0.0
    %410 = vmatpush1.xpose.msra.mxu0 0.0
    %411 = vmatprep.subr.mxu0 0.0
    %412 = vmatpush1.xpose.msra.mxu0 0.0
    %413 = vmatprep.subr.mxu0 0.0
    %414 = vmatpush1.xpose.msra.mxu0 0.0
    %415 = vmatprep.subr.mxu0 0.0
    %416 = vmatpush1.xpose.msra.mxu0 0.0
    %417 = vmatprep.subr.mxu0 0.0
    %418 = vmatpush1.xpose.msra.mxu0 0.0
    %419 = vmatprep.subr.mxu0 0.0
    %420 = vmatpush1.xpose.msra.mxu0 0.0
    %421 = vmatprep.subr.mxu0 0.0
    %422 = vmatpush1.xpose.msra.mxu0 0.0
    %423 = vmatprep.subr.mxu0 0.0
    %424 = vmatpush1.xpose.msra.mxu0 0.0
    %425 = vmatprep.subr.mxu0 0.0
    %426 = vmatpush1.xpose.msra.mxu0 0.0
    %427 = vmatprep.subr.mxu0 0.0
    %428 = vmatpush1.xpose.msra.mxu0 0.0
    %429 = vmatprep.subr.mxu0 0.0
    %430 = vmatpush1.xpose.msra.mxu0 0.0
    %431 = vmatprep.subr.mxu0 0.0
    %432 = vmatpush1.xpose.msra.mxu0 0.0
    %433 = vmatprep.mubr.f32.mxu0 0.0
    %434 = vmatmul.mubr.f32.gmra.mrb[0].mxu0 %v365
    %v435 = vpop.f32.mrb[0].mxu0
    %v436 = vadd.f32 0.0, %v435
    %v437 = vpop.f32.mrb[0].mxu0
    %438 = vdwg.mxu0
    %439 = vrot.lane.b32.xlu0 %v127, 120
    %v440 = vpop.permute.xlu0 %439
    %v441 = vsel %vm136, %v127, 0
    %v443 = vsel %vm136, %v440, 0
    %445 = vmatprep.subr.mxu0 0.0
    %446 = vmatpush1.xpose.msra.mxu0 %v443
    %447 = vmatprep.subr.mxu0 0.0
    %448 = vmatpush1.xpose.msra.mxu0 0.0
    %449 = vmatprep.subr.mxu0 0.0
    %450 = vmatpush1.xpose.msra.mxu0 0.0
    %451 = vmatprep.subr.mxu0 0.0
    %452 = vmatpush1.xpose.msra.mxu0 0.0
    %453 = vmatprep.subr.mxu0 0.0
    %454 = vmatpush1.xpose.msra.mxu0 0.0
    %455 = vmatprep.subr.mxu0 0.0
    %456 = vmatpush1.xpose.msra.mxu0 0.0
    %457 = vmatprep.subr.mxu0 0.0
    %458 = vmatpush1.xpose.msra.mxu0 0.0
    %459 = vmatprep.subr.mxu0 0.0
    %460 = vmatpush1.xpose.msra.mxu0 0.0
    %461 = vmatprep.subr.mxu0 0.0
    %462 = vmatpush1.xpose.msra.mxu0 0.0
    %463 = vmatprep.subr.mxu0 0.0
    %464 = vmatpush1.xpose.msra.mxu0 0.0
    %465 = vmatprep.subr.mxu0 0.0
    %466 = vmatpush1.xpose.msra.mxu0 0.0
    %467 = vmatprep.subr.mxu0 0.0
    %468 = vmatpush1.xpose.msra.mxu0 0.0
    %469 = vmatprep.subr.mxu0 0.0
    %470 = vmatpush1.xpose.msra.mxu0 0.0
    %471 = vmatprep.subr.mxu0 0.0
    %472 = vmatpush1.xpose.msra.mxu0 0.0
    %473 = vmatprep.subr.mxu0 0.0
    %474 = vmatpush1.xpose.msra.mxu0 0.0
    %475 = vmatprep.subr.mxu0 0.0
    %476 = vmatpush1.xpose.msra.mxu0 0.0
    %477 = vmatprep.subr.mxu0 0.0
    %478 = vmatpush1.xpose.msra.mxu0 0.0
    %479 = vmatprep.subr.mxu0 0.0
    %480 = vmatpush1.xpose.msra.mxu0 0.0
    %481 = vmatprep.subr.mxu0 0.0
    %482 = vmatpush1.xpose.msra.mxu0 0.0
    %483 = vmatprep.subr.mxu0 0.0
    %484 = vmatpush1.xpose.msra.mxu0 0.0
    %485 = vmatprep.subr.mxu0 0.0
    %486 = vmatpush1.xpose.msra.mxu0 0.0
    %487 = vmatprep.subr.mxu0 0.0
    %488 = vmatpush1.xpose.msra.mxu0 0.0
    %489 = vmatprep.subr.mxu0 0.0
    %490 = vmatpush1.xpose.msra.mxu0 0.0
    %491 = vmatprep.subr.mxu0 0.0
    %492 = vmatpush1.xpose.msra.mxu0 0.0
    %493 = vmatprep.subr.mxu0 0.0
    %494 = vmatpush1.xpose.msra.mxu0 0.0
    %495 = vmatprep.subr.mxu0 0.0
    %496 = vmatpush1.xpose.msra.mxu0 0.0
    %497 = vmatprep.subr.mxu0 0.0
    %498 = vmatpush1.xpose.msra.mxu0 0.0
    %499 = vmatprep.subr.mxu0 0.0
    %500 = vmatpush1.xpose.msra.mxu0 0.0
    %501 = vmatprep.subr.mxu0 0.0
    %502 = vmatpush1.xpose.msra.mxu0 0.0
    %503 = vmatprep.subr.mxu0 0.0
    %504 = vmatpush1.xpose.msra.mxu0 0.0
    %505 = vmatprep.subr.mxu0 0.0
    %506 = vmatpush1.xpose.msra.mxu0 0.0
    %507 = vmatprep.subr.mxu0 0.0
    %508 = vmatpush1.xpose.msra.mxu0 0.0
    %509 = vmatprep.mubr.f32.mxu0 0.0
    %510 = vmatmul.mubr.f32.gmra.mrb[0].mxu0 %v441
    %v511 = vpop.f32.mrb[0].mxu0
    %v512 = vadd.f32 0.0, %v511
    %v513 = vpop.f32.mrb[0].mxu0
    %514 = vdwg.mxu0
    %515 = vrot.lane.b32.xlu0 %v129, 120
    %v516 = vpop.permute.xlu0 %515
    %v517 = vsel %vm136, %v129, 0
    %v519 = vsel %vm136, %v516, 0
    %521 = vmatprep.subr.mxu0 0.0
    %522 = vmatpush1.xpose.msra.mxu0 %v519
    %523 = vmatprep.subr.mxu0 0.0
    %524 = vmatpush1.xpose.msra.mxu0 0.0
    %525 = vmatprep.subr.mxu0 0.0
    %526 = vmatpush1.xpose.msra.mxu0 0.0
    %527 = vmatprep.subr.mxu0 0.0
    %528 = vmatpush1.xpose.msra.mxu0 0.0
    %529 = vmatprep.subr.mxu0 0.0
    %530 = vmatpush1.xpose.msra.mxu0 0.0
    %531 = vmatprep.subr.mxu0 0.0
    %532 = vmatpush1.xpose.msra.mxu0 0.0
    %533 = vmatprep.subr.mxu0 0.0
    %534 = vmatpush1.xpose.msra.mxu0 0.0
    %535 = vmatprep.subr.mxu0 0.0
    %536 = vmatpush1.xpose.msra.mxu0 0.0
    %537 = vmatprep.subr.mxu0 0.0
    %538 = vmatpush1.xpose.msra.mxu0 0.0
    %539 = vmatprep.subr.mxu0 0.0
    %540 = vmatpush1.xpose.msra.mxu0 0.0
    %541 = vmatprep.subr.mxu0 0.0
    %542 = vmatpush1.xpose.msra.mxu0 0.0
    %543 = vmatprep.subr.mxu0 0.0
    %544 = vmatpush1.xpose.msra.mxu0 0.0
    %545 = vmatprep.subr.mxu0 0.0
    %546 = vmatpush1.xpose.msra.mxu0 0.0
    %547 = vmatprep.subr.mxu0 0.0
    %548 = vmatpush1.xpose.msra.mxu0 0.0
    %549 = vmatprep.subr.mxu0 0.0
    %550 = vmatpush1.xpose.msra.mxu0 0.0
    %551 = vmatprep.subr.mxu0 0.0
    %552 = vmatpush1.xpose.msra.mxu0 0.0
    %553 = vmatprep.subr.mxu0 0.0
    %554 = vmatpush1.xpose.msra.mxu0 0.0
    %555 = vmatprep.subr.mxu0 0.0
    %556 = vmatpush1.xpose.msra.mxu0 0.0
    %557 = vmatprep.subr.mxu0 0.0
    %558 = vmatpush1.xpose.msra.mxu0 0.0
    %559 = vmatprep.subr.mxu0 0.0
    %560 = vmatpush1.xpose.msra.mxu0 0.0
    %561 = vmatprep.subr.mxu0 0.0
    %562 = vmatpush1.xpose.msra.mxu0 0.0
    %563 = vmatprep.subr.mxu0 0.0
    %564 = vmatpush1.xpose.msra.mxu0 0.0
    %565 = vmatprep.subr.mxu0 0.0
    %566 = vmatpush1.xpose.msra.mxu0 0.0
    %567 = vmatprep.subr.mxu0 0.0
    %568 = vmatpush1.xpose.msra.mxu0 0.0
    %569 = vmatprep.subr.mxu0 0.0
    %570 = vmatpush1.xpose.msra.mxu0 0.0
    %571 = vmatprep.subr.mxu0 0.0
    %572 = vmatpush1.xpose.msra.mxu0 0.0
    %573 = vmatprep.subr.mxu0 0.0
    %574 = vmatpush1.xpose.msra.mxu0 0.0
    %575 = vmatprep.subr.mxu0 0.0
    %576 = vmatpush1.xpose.msra.mxu0 0.0
    %577 = vmatprep.subr.mxu0 0.0
    %578 = vmatpush1.xpose.msra.mxu0 0.0
    %579 = vmatprep.subr.mxu0 0.0
    %580 = vmatpush1.xpose.msra.mxu0 0.0
    %581 = vmatprep.subr.mxu0 0.0
    %582 = vmatpush1.xpose.msra.mxu0 0.0
    %583 = vmatprep.subr.mxu0 0.0
    %584 = vmatpush1.xpose.msra.mxu0 0.0
    %585 = vmatprep.mubr.f32.mxu0 0.0
    %586 = vmatmul.mubr.f32.gmra.mrb[0].mxu0 %v517
    %v587 = vpop.f32.mrb[0].mxu0
    %v588 = vadd.f32 0.0, %v587
    %v589 = vpop.f32.mrb[0].mxu0
    %590 = vdwg.mxu0
    %591 = vrot.lane.b32.xlu0 %v131, 120
    %v592 = vpop.permute.xlu0 %591
    %v593 = vsel %vm136, %v131, 0
    %v595 = vsel %vm136, %v592, 0
    %597 = vmatprep.subr.mxu0 0.0
    %598 = vmatpush1.xpose.msra.mxu0 %v595
    %599 = vmatprep.subr.mxu0 0.0
    %600 = vmatpush1.xpose.msra.mxu0 0.0
    %601 = vmatprep.subr.mxu0 0.0
    %602 = vmatpush1.xpose.msra.mxu0 0.0
    %603 = vmatprep.subr.mxu0 0.0
    %604 = vmatpush1.xpose.msra.mxu0 0.0
    %605 = vmatprep.subr.mxu0 0.0
    %606 = vmatpush1.xpose.msra.mxu0 0.0
    %607 = vmatprep.subr.mxu0 0.0
    %608 = vmatpush1.xpose.msra.mxu0 0.0
    %609 = vmatprep.subr.mxu0 0.0
    %610 = vmatpush1.xpose.msra.mxu0 0.0
    %611 = vmatprep.subr.mxu0 0.0
    %612 = vmatpush1.xpose.msra.mxu0 0.0
    %613 = vmatprep.subr.mxu0 0.0
    %614 = vmatpush1.xpose.msra.mxu0 0.0
    %615 = vmatprep.subr.mxu0 0.0
    %616 = vmatpush1.xpose.msra.mxu0 0.0
    %617 = vmatprep.subr.mxu0 0.0
    %618 = vmatpush1.xpose.msra.mxu0 0.0
    %619 = vmatprep.subr.mxu0 0.0
    %620 = vmatpush1.xpose.msra.mxu0 0.0
    %621 = vmatprep.subr.mxu0 0.0
    %622 = vmatpush1.xpose.msra.mxu0 0.0
    %623 = vmatprep.subr.mxu0 0.0
    %624 = vmatpush1.xpose.msra.mxu0 0.0
    %625 = vmatprep.subr.mxu0 0.0
    %626 = vmatpush1.xpose.msra.mxu0 0.0
    %627 = vmatprep.subr.mxu0 0.0
    %628 = vmatpush1.xpose.msra.mxu0 0.0
    %629 = vmatprep.subr.mxu0 0.0
    %630 = vmatpush1.xpose.msra.mxu0 0.0
    %631 = vmatprep.subr.mxu0 0.0
    %632 = vmatpush1.xpose.msra.mxu0 0.0
    %633 = vmatprep.subr.mxu0 0.0
    %634 = vmatpush1.xpose.msra.mxu0 0.0
    %635 = vmatprep.subr.mxu0 0.0
    %636 = vmatpush1.xpose.msra.mxu0 0.0
    %637 = vmatprep.subr.mxu0 0.0
    %638 = vmatpush1.xpose.msra.mxu0 0.0
    %639 = vmatprep.subr.mxu0 0.0
    %640 = vmatpush1.xpose.msra.mxu0 0.0
    %641 = vmatprep.subr.mxu0 0.0
    %642 = vmatpush1.xpose.msra.mxu0 0.0
    %643 = vmatprep.subr.mxu0 0.0
    %644 = vmatpush1.xpose.msra.mxu0 0.0
    %645 = vmatprep.subr.mxu0 0.0
    %646 = vmatpush1.xpose.msra.mxu0 0.0
    %647 = vmatprep.subr.mxu0 0.0
    %648 = vmatpush1.xpose.msra.mxu0 0.0
    %649 = vmatprep.subr.mxu0 0.0
    %650 = vmatpush1.xpose.msra.mxu0 0.0
    %651 = vmatprep.subr.mxu0 0.0
    %652 = vmatpush1.xpose.msra.mxu0 0.0
    %653 = vmatprep.subr.mxu0 0.0
    %654 = vmatpush1.xpose.msra.mxu0 0.0
    %655 = vmatprep.subr.mxu0 0.0
    %656 = vmatpush1.xpose.msra.mxu0 0.0
    %657 = vmatprep.subr.mxu0 0.0
    %658 = vmatpush1.xpose.msra.mxu0 0.0
    %659 = vmatprep.subr.mxu0 0.0
    %660 = vmatpush1.xpose.msra.mxu0 0.0
    %661 = vmatprep.mubr.f32.mxu0 0.0
    %662 = vmatmul.mubr.f32.gmra.mrb[0].mxu0 %v593
    %v663 = vpop.f32.mrb[0].mxu0
    %v664 = vadd.f32 0.0, %v663
    %v665 = vpop.f32.mrb[0].mxu0
    %666 = vdwg.mxu0
    %667 = vrot.lane.b32.xlu0 %v133, 120
    %v668 = vpop.permute.xlu0 %667
    %v669 = vsel %vm136, %v133, 0
    %v671 = vsel %vm136, %v668, 0
    %673 = vmatprep.subr.mxu0 0.0
    %674 = vmatpush1.xpose.msra.mxu0 %v671
    %675 = vmatprep.subr.mxu0 0.0
    %676 = vmatpush1.xpose.msra.mxu0 0.0
    %677 = vmatprep.subr.mxu0 0.0
    %678 = vmatpush1.xpose.msra.mxu0 0.0
    %679 = vmatprep.subr.mxu0 0.0
    %680 = vmatpush1.xpose.msra.mxu0 0.0
    %681 = vmatprep.subr.mxu0 0.0
    %682 = vmatpush1.xpose.msra.mxu0 0.0
    %683 = vmatprep.subr.mxu0 0.0
    %684 = vmatpush1.xpose.msra.mxu0 0.0
    %685 = vmatprep.subr.mxu0 0.0
    %686 = vmatpush1.xpose.msra.mxu0 0.0
    %687 = vmatprep.subr.mxu0 0.0
    %688 = vmatpush1.xpose.msra.mxu0 0.0
    %689 = vmatprep.subr.mxu0 0.0
    %690 = vmatpush1.xpose.msra.mxu0 0.0
    %691 = vmatprep.subr.mxu0 0.0
    %692 = vmatpush1.xpose.msra.mxu0 0.0
    %693 = vmatprep.subr.mxu0 0.0
    %694 = vmatpush1.xpose.msra.mxu0 0.0
    %695 = vmatprep.subr.mxu0 0.0
    %696 = vmatpush1.xpose.msra.mxu0 0.0
    %697 = vmatprep.subr.mxu0 0.0
    %698 = vmatpush1.xpose.msra.mxu0 0.0
    %699 = vmatprep.subr.mxu0 0.0
    %700 = vmatpush1.xpose.msra.mxu0 0.0
    %701 = vmatprep.subr.mxu0 0.0
    %702 = vmatpush1.xpose.msra.mxu0 0.0
    %703 = vmatprep.subr.mxu0 0.0
    %704 = vmatpush1.xpose.msra.mxu0 0.0
    %705 = vmatprep.subr.mxu0 0.0
    %706 = vmatpush1.xpose.msra.mxu0 0.0
    %707 = vmatprep.subr.mxu0 0.0
    %708 = vmatpush1.xpose.msra.mxu0 0.0
    %709 = vmatprep.subr.mxu0 0.0
    %710 = vmatpush1.xpose.msra.mxu0 0.0
    %711 = vmatprep.subr.mxu0 0.0
    %712 = vmatpush1.xpose.msra.mxu0 0.0
    %713 = vmatprep.subr.mxu0 0.0
    %714 = vmatpush1.xpose.msra.mxu0 0.0
    %715 = vmatprep.subr.mxu0 0.0
    %716 = vmatpush1.xpose.msra.mxu0 0.0
    %717 = vmatprep.subr.mxu0 0.0
    %718 = vmatpush1.xpose.msra.mxu0 0.0
    %719 = vmatprep.subr.mxu0 0.0
    %720 = vmatpush1.xpose.msra.mxu0 0.0
    %721 = vmatprep.subr.mxu0 0.0
    %722 = vmatpush1.xpose.msra.mxu0 0.0
    %723 = vmatprep.subr.mxu0 0.0
    %724 = vmatpush1.xpose.msra.mxu0 0.0
    %725 = vmatprep.subr.mxu0 0.0
    %726 = vmatpush1.xpose.msra.mxu0 0.0
    %727 = vmatprep.subr.mxu0 0.0
    %728 = vmatpush1.xpose.msra.mxu0 0.0
    %729 = vmatprep.subr.mxu0 0.0
    %730 = vmatpush1.xpose.msra.mxu0 0.0
    %731 = vmatprep.subr.mxu0 0.0
    %732 = vmatpush1.xpose.msra.mxu0 0.0
    %733 = vmatprep.subr.mxu0 0.0
    %734 = vmatpush1.xpose.msra.mxu0 0.0
    %735 = vmatprep.subr.mxu0 0.0
    %736 = vmatpush1.xpose.msra.mxu0 0.0
    %737 = vmatprep.mubr.f32.mxu0 0.0
    %738 = vmatmul.mubr.f32.gmra.mrb[0].mxu0 %v669
    %v739 = vpop.f32.mrb[0].mxu0
    %v740 = vadd.f32 0.0, %v739
    %v741 = vpop.f32.mrb[0].mxu0
    %742 = vdwg.mxu0
    %v743 = vmul.f32 %v208, 0.35355338
    %v744 = vmul.f32 %v284, 0.35355338
    %v745 = vmul.f32 %v360, 0.35355338
    %v746 = vmul.f32 %v436, 0.35355338
    %v747 = vmul.f32 %v512, 0.35355338
    %v748 = vmul.f32 %v588, 0.35355338
    %v749 = vmul.f32 %v664, 0.35355338
    %v750 = vmul.f32 %v740, 0.35355338
    %v751 = vsel %vm136, %v743, -inf
    %752 = vmax.xlane.f32.xlu0 %v751
    %v753 = vpop.xlane.xlu0 %752
    %v754 = vsel %vm136, %v744, -inf
    %755 = vmax.xlane.f32.xlu0 %v754
    %v756 = vpop.xlane.xlu0 %755
    %v757 = vsel %vm136, %v745, -inf
    %758 = vmax.xlane.f32.xlu0 %v757
    %v759 = vpop.xlane.xlu0 %758
    %v760 = vsel %vm136, %v746, -inf
    %761 = vmax.xlane.f32.xlu0 %v760
    %v762 = vpop.xlane.xlu0 %761
    %v763 = vsel %vm136, %v747, -inf
    %764 = vmax.xlane.f32.xlu0 %v763
    %v765 = vpop.xlane.xlu0 %764
    %v766 = vsel %vm136, %v748, -inf
    %767 = vmax.xlane.f32.xlu0 %v766
    %v768 = vpop.xlane.xlu0 %767
    %v769 = vsel %vm136, %v749, -inf
    %770 = vmax.xlane.f32.xlu0 %v769
    %v771 = vpop.xlane.xlu0 %770
    %v772 = vsel %vm136, %v750, -inf
    %773 = vmax.xlane.f32.xlu0 %v772
    %v774 = vpop.xlane.xlu0 %773
    %v775 = vsub.f32 %v743, %v753
    %v776 = vsub.f32 %v744, %v756
    %v777 = vsub.f32 %v745, %v759
    %v778 = vsub.f32 %v746, %v762
    %v779 = vsub.f32 %v747, %v765
    %v780 = vsub.f32 %v748, %v768
    %v781 = vsub.f32 %v749, %v771
    %v782 = vsub.f32 %v750, %v774
    %v783 = vmul.f32 %v775, 1.442695
    %v784 = vpow.pop %v783
    %v785 = vmul.f32 %v776, 1.442695
    %v786 = vpow.pop %v785
    %v787 = vmul.f32 %v777, 1.442695
    %v788 = vpow.pop %v787
    %v789 = vmul.f32 %v778, 1.442695
    %v790 = vpow.pop %v789
    %v791 = vmul.f32 %v779, 1.442695
    %v792 = vpow.pop %v791
    %v793 = vmul.f32 %v780, 1.442695
    %v794 = vpow.pop %v793
    %v795 = vmul.f32 %v781, 1.442695
    %v796 = vpow.pop %v795
    %v797 = vmul.f32 %v782, 1.442695
    %v798 = vpow.pop %v797
    %v799 = vsel %vm136, %v784, 0.0
    %800 = vadd.xlane.f32.xlu0 %v799
    %v801 = vpop.xlane.xlu0 %800
    %v802 = vsel %vm136, %v786, 0.0
    %803 = vadd.xlane.f32.xlu0 %v802
    %v804 = vpop.xlane.xlu0 %803
    %v805 = vsel %vm136, %v788, 0.0
    %806 = vadd.xlane.f32.xlu0 %v805
    %v807 = vpop.xlane.xlu0 %806
    %v808 = vsel %vm136, %v790, 0.0
    %809 = vadd.xlane.f32.xlu0 %v808
    %v810 = vpop.xlane.xlu0 %809
    %v811 = vsel %vm136, %v792, 0.0
    %812 = vadd.xlane.f32.xlu0 %v811
    %v813 = vpop.xlane.xlu0 %812
    %v814 = vsel %vm136, %v794, 0.0
    %815 = vadd.xlane.f32.xlu0 %v814
    %v816 = vpop.xlane.xlu0 %815
    %v817 = vsel %vm136, %v796, 0.0
    %818 = vadd.xlane.f32.xlu0 %v817
    %v819 = vpop.xlane.xlu0 %818
    %v820 = vsel %vm136, %v798, 0.0
    %821 = vadd.xlane.f32.xlu0 %v820
    %v822 = vpop.xlane.xlu0 %821
    %v823 = vrcp.pop %v801
    %v824 = vrcp.pop %v804
    %v825 = vrcp.pop %v807
    %v826 = vrcp.pop %v810
    %v827 = vrcp.pop %v813
    %v828 = vrcp.pop %v816
    %v829 = vrcp.pop %v819
    %v830 = vrcp.pop %v822
    %v831 = vmul.f32 %v784, %v823
    %v832 = vmul.f32 %v786, %v824
    %v833 = vmul.f32 %v788, %v825
    %v834 = vmul.f32 %v790, %v826
    %v835 = vmul.f32 %v792, %v827
    %v836 = vmul.f32 %v794, %v828
    %v837 = vmul.f32 %v796, %v829
    %v838 = vmul.f32 %v798, %v830
    %839 = vrot.lane.b32.xlu0 %v112, 112
    %v840 = vpop.permute.xlu0 %839
    %v843 = vsel %vm136, %v831, 0
    %845 = vmatprep.subr.mxu0 0.0
    %846 = vmatpush1.msra.mxu0 %v840
    %847 = vmatprep.subr.mxu0 0.0
    %848 = vmatpush1.msra.mxu0 0.0
    %849 = vmatprep.subr.mxu0 0.0
    %850 = vmatpush1.msra.mxu0 0.0
    %851 = vmatprep.subr.mxu0 0.0
    %852 = vmatpush1.msra.mxu0 0.0
    %853 = vmatprep.subr.mxu0 0.0
    %854 = vmatpush1.msra.mxu0 0.0
    %855 = vmatprep.subr.mxu0 0.0
    %856 = vmatpush1.msra.mxu0 0.0
    %857 = vmatprep.subr.mxu0 0.0
    %858 = vmatpush1.msra.mxu0 0.0
    %859 = vmatprep.subr.mxu0 0.0
    %860 = vmatpush1.msra.mxu0 0.0
    %861 = vmatprep.subr.mxu0 0.0
    %862 = vmatpush1.msra.mxu0 0.0
    %863 = vmatprep.subr.mxu0 0.0
    %864 = vmatpush1.msra.mxu0 0.0
    %865 = vmatprep.subr.mxu0 0.0
    %866 = vmatpush1.msra.mxu0 0.0
    %867 = vmatprep.subr.mxu0 0.0
    %868 = vmatpush1.msra.mxu0 0.0
    %869 = vmatprep.subr.mxu0 0.0
    %870 = vmatpush1.msra.mxu0 0.0
    %871 = vmatprep.subr.mxu0 0.0
    %872 = vmatpush1.msra.mxu0 0.0
    %873 = vmatprep.subr.mxu0 0.0
    %874 = vmatpush1.msra.mxu0 0.0
    %875 = vmatprep.subr.mxu0 0.0
    %876 = vmatpush1.msra.mxu0 0.0
    %877 = vmatprep.subr.mxu0 0.0
    %878 = vmatpush1.msra.mxu0 0.0
    %879 = vmatprep.subr.mxu0 0.0
    %880 = vmatpush1.msra.mxu0 0.0
    %881 = vmatprep.subr.mxu0 0.0
    %882 = vmatpush1.msra.mxu0 0.0
    %883 = vmatprep.subr.mxu0 0.0
    %884 = vmatpush1.msra.mxu0 0.0
    %885 = vmatprep.subr.mxu0 0.0
    %886 = vmatpush1.msra.mxu0 0.0
    %887 = vmatprep.subr.mxu0 0.0
    %888 = vmatpush1.msra.mxu0 0.0
    %889 = vmatprep.subr.mxu0 0.0
    %890 = vmatpush1.msra.mxu0 0.0
    %891 = vmatprep.subr.mxu0 0.0
    %892 = vmatpush1.msra.mxu0 0.0
    %893 = vmatprep.subr.mxu0 0.0
    %894 = vmatpush1.msra.mxu0 0.0
    %895 = vmatprep.subr.mxu0 0.0
    %896 = vmatpush1.msra.mxu0 0.0
    %897 = vmatprep.subr.mxu0 0.0
    %898 = vmatpush1.msra.mxu0 0.0
    %899 = vmatprep.subr.mxu0 0.0
    %900 = vmatpush1.msra.mxu0 0.0
    %901 = vmatprep.subr.mxu0 0.0
    %902 = vmatpush1.msra.mxu0 0.0
    %903 = vmatprep.subr.mxu0 0.0
    %904 = vmatpush1.msra.mxu0 0.0
    %905 = vmatprep.subr.mxu0 0.0
    %906 = vmatpush1.msra.mxu0 0.0
    %907 = vmatprep.subr.mxu0 0.0
    %908 = vmatpush1.msra.mxu0 0.0
    %909 = vmatprep.mubr.f32.mxu0 0.0
    %910 = vmatmul.mubr.f32.gmra.mrb[0].mxu0 %v843
    %v911 = vpop.f32.mrb[0].mxu0
    %v912 = vadd.f32 0.0, %v911
    %v913 = vpop.f32.mrb[0].mxu0
    %914 = vdwg.mxu0
    %915 = vrot.lane.b32.xlu0 %v117, 112
    %v916 = vpop.permute.xlu0 %915
    %v919 = vsel %vm136, %v832, 0
    %921 = vmatprep.subr.mxu0 0.0
    %922 = vmatpush1.msra.mxu0 %v916
    %923 = vmatprep.subr.mxu0 0.0
    %924 = vmatpush1.msra.mxu0 0.0
    %925 = vmatprep.subr.mxu0 0.0
    %926 = vmatpush1.msra.mxu0 0.0
    %927 = vmatprep.subr.mxu0 0.0
    %928 = vmatpush1.msra.mxu0 0.0
    %929 = vmatprep.subr.mxu0 0.0
    %930 = vmatpush1.msra.mxu0 0.0
    %931 = vmatprep.subr.mxu0 0.0
    %932 = vmatpush1.msra.mxu0 0.0
    %933 = vmatprep.subr.mxu0 0.0
    %934 = vmatpush1.msra.mxu0 0.0
    %935 = vmatprep.subr.mxu0 0.0
    %936 = vmatpush1.msra.mxu0 0.0
    %937 = vmatprep.subr.mxu0 0.0
    %938 = vmatpush1.msra.mxu0 0.0
    %939 = vmatprep.subr.mxu0 0.0
    %940 = vmatpush1.msra.mxu0 0.0
    %941 = vmatprep.subr.mxu0 0.0
    %942 = vmatpush1.msra.mxu0 0.0
    %943 = vmatprep.subr.mxu0 0.0
    %944 = vmatpush1.msra.mxu0 0.0
    %945 = vmatprep.subr.mxu0 0.0
    %946 = vmatpush1.msra.mxu0 0.0
    %947 = vmatprep.subr.mxu0 0.0
    %948 = vmatpush1.msra.mxu0 0.0
    %949 = vmatprep.subr.mxu0 0.0
    %950 = vmatpush1.msra.mxu0 0.0
    %951 = vmatprep.subr.mxu0 0.0
    %952 = vmatpush1.msra.mxu0 0.0
    %953 = vmatprep.subr.mxu0 0.0
    %954 = vmatpush1.msra.mxu0 0.0
    %955 = vmatprep.subr.mxu0 0.0
    %956 = vmatpush1.msra.mxu0 0.0
    %957 = vmatprep.subr.mxu0 0.0
    %958 = vmatpush1.msra.mxu0 0.0
    %959 = vmatprep.subr.mxu0 0.0
    %960 = vmatpush1.msra.mxu0 0.0
    %961 = vmatprep.subr.mxu0 0.0
    %962 = vmatpush1.msra.mxu0 0.0
    %963 = vmatprep.subr.mxu0 0.0
    %964 = vmatpush1.msra.mxu0 0.0
    %965 = vmatprep.subr.mxu0 0.0
    %966 = vmatpush1.msra.mxu0 0.0
    %967 = vmatprep.subr.mxu0 0.0
    %968 = vmatpush1.msra.mxu0 0.0
    %969 = vmatprep.subr.mxu0 0.0
    %970 = vmatpush1.msra.mxu0 0.0
    %971 = vmatprep.subr.mxu0 0.0
    %972 = vmatpush1.msra.mxu0 0.0
    %973 = vmatprep.subr.mxu0 0.0
    %974 = vmatpush1.msra.mxu0 0.0
    %975 = vmatprep.subr.mxu0 0.0
    %976 = vmatpush1.msra.mxu0 0.0
    %977 = vmatprep.subr.mxu0 0.0
    %978 = vmatpush1.msra.mxu0 0.0
    %979 = vmatprep.subr.mxu0 0.0
    %980 = vmatpush1.msra.mxu0 0.0
    %981 = vmatprep.subr.mxu0 0.0
    %982 = vmatpush1.msra.mxu0 0.0
    %983 = vmatprep.subr.mxu0 0.0
    %984 = vmatpush1.msra.mxu0 0.0
    %985 = vmatprep.mubr.f32.mxu0 0.0
    %986 = vmatmul.mubr.f32.gmra.mrb[0].mxu0 %v919
    %v987 = vpop.f32.mrb[0].mxu0
    %v988 = vadd.f32 0.0, %v987
    %v989 = vpop.f32.mrb[0].mxu0
    %990 = vdwg.mxu0
    %991 = vrot.lane.b32.xlu0 %v123, 112
    %v992 = vpop.permute.xlu0 %991
    %v995 = vsel %vm136, %v833, 0
    %997 = vmatprep.subr.mxu0 0.0
    %998 = vmatpush1.msra.mxu0 %v992
    %999 = vmatprep.subr.mxu0 0.0
    %1000 = vmatpush1.msra.mxu0 0.0
    %1001 = vmatprep.subr.mxu0 0.0
    %1002 = vmatpush1.msra.mxu0 0.0
    %1003 = vmatprep.subr.mxu0 0.0
    %1004 = vmatpush1.msra.mxu0 0.0
    %1005 = vmatprep.subr.mxu0 0.0
    %1006 = vmatpush1.msra.mxu0 0.0
    %1007 = vmatprep.subr.mxu0 0.0
    %1008 = vmatpush1.msra.mxu0 0.0
    %1009 = vmatprep.subr.mxu0 0.0
    %1010 = vmatpush1.msra.mxu0 0.0
    %1011 = vmatprep.subr.mxu0 0.0
    %1012 = vmatpush1.msra.mxu0 0.0
    %1013 = vmatprep.subr.mxu0 0.0
    %1014 = vmatpush1.msra.mxu0 0.0
    %1015 = vmatprep.subr.mxu0 0.0
    %1016 = vmatpush1.msra.mxu0 0.0
    %1017 = vmatprep.subr.mxu0 0.0
    %1018 = vmatpush1.msra.mxu0 0.0
    %1019 = vmatprep.subr.mxu0 0.0
    %1020 = vmatpush1.msra.mxu0 0.0
    %1021 = vmatprep.subr.mxu0 0.0
    %1022 = vmatpush1.msra.mxu0 0.0
    %1023 = vmatprep.subr.mxu0 0.0
    %1024 = vmatpush1.msra.mxu0 0.0
    %1025 = vmatprep.subr.mxu0 0.0
    %1026 = vmatpush1.msra.mxu0 0.0
    %1027 = vmatprep.subr.mxu0 0.0
    %1028 = vmatpush1.msra.mxu0 0.0
    %1029 = vmatprep.subr.mxu0 0.0
    %1030 = vmatpush1.msra.mxu0 0.0
    %1031 = vmatprep.subr.mxu0 0.0
    %1032 = vmatpush1.msra.mxu0 0.0
    %1033 = vmatprep.subr.mxu0 0.0
    %1034 = vmatpush1.msra.mxu0 0.0
    %1035 = vmatprep.subr.mxu0 0.0
    %1036 = vmatpush1.msra.mxu0 0.0
    %1037 = vmatprep.subr.mxu0 0.0
    %1038 = vmatpush1.msra.mxu0 0.0
    %1039 = vmatprep.subr.mxu0 0.0
    %1040 = vmatpush1.msra.mxu0 0.0
    %1041 = vmatprep.subr.mxu0 0.0
    %1042 = vmatpush1.msra.mxu0 0.0
    %1043 = vmatprep.subr.mxu0 0.0
    %1044 = vmatpush1.msra.mxu0 0.0
    %1045 = vmatprep.subr.mxu0 0.0
    %1046 = vmatpush1.msra.mxu0 0.0
    %1047 = vmatprep.subr.mxu0 0.0
    %1048 = vmatpush1.msra.mxu0 0.0
    %1049 = vmatprep.subr.mxu0 0.0
    %1050 = vmatpush1.msra.mxu0 0.0
    %1051 = vmatprep.subr.mxu0 0.0
    %1052 = vmatpush1.msra.mxu0 0.0
    %1053 = vmatprep.subr.mxu0 0.0
    %1054 = vmatpush1.msra.mxu0 0.0
    %1055 = vmatprep.subr.mxu0 0.0
    %1056 = vmatpush1.msra.mxu0 0.0
    %1057 = vmatprep.subr.mxu0 0.0
    %1058 = vmatpush1.msra.mxu0 0.0
    %1059 = vmatprep.subr.mxu0 0.0
    %1060 = vmatpush1.msra.mxu0 0.0
    %1061 = vmatprep.mubr.f32.mxu0 0.0
    %1062 = vmatmul.mubr.f32.gmra.mrb[0].mxu0 %v995
    %v1063 = vpop.f32.mrb[0].mxu0
    %v1064 = vadd.f32 0.0, %v1063
    %v1065 = vpop.f32.mrb[0].mxu0
    %1066 = vdwg.mxu0
    %1067 = vrot.lane.b32.xlu0 %v125, 112
    %v1068 = vpop.permute.xlu0 %1067
    %v1071 = vsel %vm136, %v834, 0
    %1073 = vmatprep.subr.mxu0 0.0
    %1074 = vmatpush1.msra.mxu0 %v1068
    %1075 = vmatprep.subr.mxu0 0.0
    %1076 = vmatpush1.msra.mxu0 0.0
    %1077 = vmatprep.subr.mxu0 0.0
    %1078 = vmatpush1.msra.mxu0 0.0
    %1079 = vmatprep.subr.mxu0 0.0
    %1080 = vmatpush1.msra.mxu0 0.0
    %1081 = vmatprep.subr.mxu0 0.0
    %1082 = vmatpush1.msra.mxu0 0.0
    %1083 = vmatprep.subr.mxu0 0.0
    %1084 = vmatpush1.msra.mxu0 0.0
    %1085 = vmatprep.subr.mxu0 0.0
    %1086 = vmatpush1.msra.mxu0 0.0
    %1087 = vmatprep.subr.mxu0 0.0
    %1088 = vmatpush1.msra.mxu0 0.0
    %1089 = vmatprep.subr.mxu0 0.0
    %1090 = vmatpush1.msra.mxu0 0.0
    %1091 = vmatprep.subr.mxu0 0.0
    %1092 = vmatpush1.msra.mxu0 0.0
    %1093 = vmatprep.subr.mxu0 0.0
    %1094 = vmatpush1.msra.mxu0 0.0
    %1095 = vmatprep.subr.mxu0 0.0
    %1096 = vmatpush1.msra.mxu0 0.0
    %1097 = vmatprep.subr.mxu0 0.0
    %1098 = vmatpush1.msra.mxu0 0.0
    %1099 = vmatprep.subr.mxu0 0.0
    %1100 = vmatpush1.msra.mxu0 0.0
    %1101 = vmatprep.subr.mxu0 0.0
    %1102 = vmatpush1.msra.mxu0 0.0
    %1103 = vmatprep.subr.mxu0 0.0
    %1104 = vmatpush1.msra.mxu0 0.0
    %1105 = vmatprep.subr.mxu0 0.0
    %1106 = vmatpush1.msra.mxu0 0.0
    %1107 = vmatprep.subr.mxu0 0.0
    %1108 = vmatpush1.msra.mxu0 0.0
    %1109 = vmatprep.subr.mxu0 0.0
    %1110 = vmatpush1.msra.mxu0 0.0
    %1111 = vmatprep.subr.mxu0 0.0
    %1112 = vmatpush1.msra.mxu0 0.0
    %1113 = vmatprep.subr.mxu0 0.0
    %1114 = vmatpush1.msra.mxu0 0.0
    %1115 = vmatprep.subr.mxu0 0.0
    %1116 = vmatpush1.msra.mxu0 0.0
    %1117 = vmatprep.subr.mxu0 0.0
    %1118 = vmatpush1.msra.mxu0 0.0
    %1119 = vmatprep.subr.mxu0 0.0
    %1120 = vmatpush1.msra.mxu0 0.0
    %1121 = vmatprep.subr.mxu0 0.0
    %1122 = vmatpush1.msra.mxu0 0.0
    %1123 = vmatprep.subr.mxu0 0.0
    %1124 = vmatpush1.msra.mxu0 0.0
    %1125 = vmatprep.subr.mxu0 0.0
    %1126 = vmatpush1.msra.mxu0 0.0
    %1127 = vmatprep.subr.mxu0 0.0
    %1128 = vmatpush1.msra.mxu0 0.0
    %1129 = vmatprep.subr.mxu0 0.0
    %1130 = vmatpush1.msra.mxu0 0.0
    %1131 = vmatprep.subr.mxu0 0.0
    %1132 = vmatpush1.msra.mxu0 0.0
    %1133 = vmatprep.subr.mxu0 0.0
    %1134 = vmatpush1.msra.mxu0 0.0
    %1135 = vmatprep.subr.mxu0 0.0
    %1136 = vmatpush1.msra.mxu0 0.0
    %1137 = vmatprep.mubr.f32.mxu0 0.0
    %1138 = vmatmul.mubr.f32.gmra.mrb[0].mxu0 %v1071
    %v1139 = vpop.f32.mrb[0].mxu0
    %v1140 = vadd.f32 0.0, %v1139
    %v1141 = vpop.f32.mrb[0].mxu0
    %1142 = vdwg.mxu0
    %1143 = vrot.lane.b32.xlu0 %v127, 112
    %v1144 = vpop.permute.xlu0 %1143
    %v1147 = vsel %vm136, %v835, 0
    %1149 = vmatprep.subr.mxu0 0.0
    %1150 = vmatpush1.msra.mxu0 %v1144
    %1151 = vmatprep.subr.mxu0 0.0
    %1152 = vmatpush1.msra.mxu0 0.0
    %1153 = vmatprep.subr.mxu0 0.0
    %1154 = vmatpush1.msra.mxu0 0.0
    %1155 = vmatprep.subr.mxu0 0.0
    %1156 = vmatpush1.msra.mxu0 0.0
    %1157 = vmatprep.subr.mxu0 0.0
    %1158 = vmatpush1.msra.mxu0 0.0
    %1159 = vmatprep.subr.mxu0 0.0
    %1160 = vmatpush1.msra.mxu0 0.0
    %1161 = vmatprep.subr.mxu0 0.0
    %1162 = vmatpush1.msra.mxu0 0.0
    %1163 = vmatprep.subr.mxu0 0.0
    %1164 = vmatpush1.msra.mxu0 0.0
    %1165 = vmatprep.subr.mxu0 0.0
    %1166 = vmatpush1.msra.mxu0 0.0
    %1167 = vmatprep.subr.mxu0 0.0
    %1168 = vmatpush1.msra.mxu0 0.0
    %1169 = vmatprep.subr.mxu0 0.0
    %1170 = vmatpush1.msra.mxu0 0.0
    %1171 = vmatprep.subr.mxu0 0.0
    %1172 = vmatpush1.msra.mxu0 0.0
    %1173 = vmatprep.subr.mxu0 0.0
    %1174 = vmatpush1.msra.mxu0 0.0
    %1175 = vmatprep.subr.mxu0 0.0
    %1176 = vmatpush1.msra.mxu0 0.0
    %1177 = vmatprep.subr.mxu0 0.0
    %1178 = vmatpush1.msra.mxu0 0.0
    %1179 = vmatprep.subr.mxu0 0.0
    %1180 = vmatpush1.msra.mxu0 0.0
    %1181 = vmatprep.subr.mxu0 0.0
    %1182 = vmatpush1.msra.mxu0 0.0
    %1183 = vmatprep.subr.mxu0 0.0
    %1184 = vmatpush1.msra.mxu0 0.0
    %1185 = vmatprep.subr.mxu0 0.0
    %1186 = vmatpush1.msra.mxu0 0.0
    %1187 = vmatprep.subr.mxu0 0.0
    %1188 = vmatpush1.msra.mxu0 0.0
    %1189 = vmatprep.subr.mxu0 0.0
    %1190 = vmatpush1.msra.mxu0 0.0
    %1191 = vmatprep.subr.mxu0 0.0
    %1192 = vmatpush1.msra.mxu0 0.0
    %1193 = vmatprep.subr.mxu0 0.0
    %1194 = vmatpush1.msra.mxu0 0.0
    %1195 = vmatprep.subr.mxu0 0.0
    %1196 = vmatpush1.msra.mxu0 0.0
    %1197 = vmatprep.subr.mxu0 0.0
    %1198 = vmatpush1.msra.mxu0 0.0
    %1199 = vmatprep.subr.mxu0 0.0
    %1200 = vmatpush1.msra.mxu0 0.0
    %1201 = vmatprep.subr.mxu0 0.0
    %1202 = vmatpush1.msra.mxu0 0.0
    %1203 = vmatprep.subr.mxu0 0.0
    %1204 = vmatpush1.msra.mxu0 0.0
    %1205 = vmatprep.subr.mxu0 0.0
    %1206 = vmatpush1.msra.mxu0 0.0
    %1207 = vmatprep.subr.mxu0 0.0
    %1208 = vmatpush1.msra.mxu0 0.0
    %1209 = vmatprep.subr.mxu0 0.0
    %1210 = vmatpush1.msra.mxu0 0.0
    %1211 = vmatprep.subr.mxu0 0.0
    %1212 = vmatpush1.msra.mxu0 0.0
    %1213 = vmatprep.mubr.f32.mxu0 0.0
    %1214 = vmatmul.mubr.f32.gmra.mrb[0].mxu0 %v1147
    %v1215 = vpop.f32.mrb[0].mxu0
    %v1216 = vadd.f32 0.0, %v1215
    %v1217 = vpop.f32.mrb[0].mxu0
    %1218 = vdwg.mxu0
    %1219 = vrot.lane.b32.xlu0 %v129, 112
    %v1220 = vpop.permute.xlu0 %1219
    %v1223 = vsel %vm136, %v836, 0
    %1225 = vmatprep.subr.mxu0 0.0
    %1226 = vmatpush1.msra.mxu0 %v1220
    %1227 = vmatprep.subr.mxu0 0.0
    %1228 = vmatpush1.msra.mxu0 0.0
    %1229 = vmatprep.subr.mxu0 0.0
    %1230 = vmatpush1.msra.mxu0 0.0
    %1231 = vmatprep.subr.mxu0 0.0
    %1232 = vmatpush1.msra.mxu0 0.0
    %1233 = vmatprep.subr.mxu0 0.0
    %1234 = vmatpush1.msra.mxu0 0.0
    %1235 = vmatprep.subr.mxu0 0.0
    %1236 = vmatpush1.msra.mxu0 0.0
    %1237 = vmatprep.subr.mxu0 0.0
    %1238 = vmatpush1.msra.mxu0 0.0
    %1239 = vmatprep.subr.mxu0 0.0
    %1240 = vmatpush1.msra.mxu0 0.0
    %1241 = vmatprep.subr.mxu0 0.0
    %1242 = vmatpush1.msra.mxu0 0.0
    %1243 = vmatprep.subr.mxu0 0.0
    %1244 = vmatpush1.msra.mxu0 0.0
    %1245 = vmatprep.subr.mxu0 0.0
    %1246 = vmatpush1.msra.mxu0 0.0
    %1247 = vmatprep.subr.mxu0 0.0
    %1248 = vmatpush1.msra.mxu0 0.0
    %1249 = vmatprep.subr.mxu0 0.0
    %1250 = vmatpush1.msra.mxu0 0.0
    %1251 = vmatprep.subr.mxu0 0.0
    %1252 = vmatpush1.msra.mxu0 0.0
    %1253 = vmatprep.subr.mxu0 0.0
    %1254 = vmatpush1.msra.mxu0 0.0
    %1255 = vmatprep.subr.mxu0 0.0
    %1256 = vmatpush1.msra.mxu0 0.0
    %1257 = vmatprep.subr.mxu0 0.0
    %1258 = vmatpush1.msra.mxu0 0.0
    %1259 = vmatprep.subr.mxu0 0.0
    %1260 = vmatpush1.msra.mxu0 0.0
    %1261 = vmatprep.subr.mxu0 0.0
    %1262 = vmatpush1.msra.mxu0 0.0
    %1263 = vmatprep.subr.mxu0 0.0
    %1264 = vmatpush1.msra.mxu0 0.0
    %1265 = vmatprep.subr.mxu0 0.0
    %1266 = vmatpush1.msra.mxu0 0.0
    %1267 = vmatprep.subr.mxu0 0.0
    %1268 = vmatpush1.msra.mxu0 0.0
    %1269 = vmatprep.subr.mxu0 0.0
    %1270 = vmatpush1.msra.mxu0 0.0
    %1271 = vmatprep.subr.mxu0 0.0
    %1272 = vmatpush1.msra.mxu0 0.0
    %1273 = vmatprep.subr.mxu0 0.0
    %1274 = vmatpush1.msra.mxu0 0.0
    %1275 = vmatprep.subr.mxu0 0.0
    %1276 = vmatpush1.msra.mxu0 0.0
    %1277 = vmatprep.subr.mxu0 0.0
    %1278 = vmatpush1.msra.mxu0 0.0
    %1279 = vmatprep.subr.mxu0 0.0
    %1280 = vmatpush1.msra.mxu0 0.0
    %1281 = vmatprep.subr.mxu0 0.0
    %1282 = vmatpush1.msra.mxu0 0.0
    %1283 = vmatprep.subr.mxu0 0.0
    %1284 = vmatpush1.msra.mxu0 0.0
    %1285 = vmatprep.subr.mxu0 0.0
    %1286 = vmatpush1.msra.mxu0 0.0
    %1287 = vmatprep.subr.mxu0 0.0
    %1288 = vmatpush1.msra.mxu0 0.0
    %1289 = vmatprep.mubr.f32.mxu0 0.0
    %1290 = vmatmul.mubr.f32.gmra.mrb[0].mxu0 %v1223
    %v1291 = vpop.f32.mrb[0].mxu0
    %v1292 = vadd.f32 0.0, %v1291
    %v1293 = vpop.f32.mrb[0].mxu0
    %1294 = vdwg.mxu0
    %1295 = vrot.lane.b32.xlu0 %v131, 112
    %v1296 = vpop.permute.xlu0 %1295
    %v1299 = vsel %vm136, %v837, 0
    %1301 = vmatprep.subr.mxu0 0.0
    %1302 = vmatpush1.msra.mxu0 %v1296
    %1303 = vmatprep.subr.mxu0 0.0
    %1304 = vmatpush1.msra.mxu0 0.0
    %1305 = vmatprep.subr.mxu0 0.0
    %1306 = vmatpush1.msra.mxu0 0.0
    %1307 = vmatprep.subr.mxu0 0.0
    %1308 = vmatpush1.msra.mxu0 0.0
    %1309 = vmatprep.subr.mxu0 0.0
    %1310 = vmatpush1.msra.mxu0 0.0
    %1311 = vmatprep.subr.mxu0 0.0
    %1312 = vmatpush1.msra.mxu0 0.0
    %1313 = vmatprep.subr.mxu0 0.0
    %1314 = vmatpush1.msra.mxu0 0.0
    %1315 = vmatprep.subr.mxu0 0.0
    %1316 = vmatpush1.msra.mxu0 0.0
    %1317 = vmatprep.subr.mxu0 0.0
    %1318 = vmatpush1.msra.mxu0 0.0
    %1319 = vmatprep.subr.mxu0 0.0
    %1320 = vmatpush1.msra.mxu0 0.0
    %1321 = vmatprep.subr.mxu0 0.0
    %1322 = vmatpush1.msra.mxu0 0.0
    %1323 = vmatprep.subr.mxu0 0.0
    %1324 = vmatpush1.msra.mxu0 0.0
    %1325 = vmatprep.subr.mxu0 0.0
    %1326 = vmatpush1.msra.mxu0 0.0
    %1327 = vmatprep.subr.mxu0 0.0
    %1328 = vmatpush1.msra.mxu0 0.0
    %1329 = vmatprep.subr.mxu0 0.0
    %1330 = vmatpush1.msra.mxu0 0.0
    %1331 = vmatprep.subr.mxu0 0.0
    %1332 = vmatpush1.msra.mxu0 0.0
    %1333 = vmatprep.subr.mxu0 0.0
    %1334 = vmatpush1.msra.mxu0 0.0
    %1335 = vmatprep.subr.mxu0 0.0
    %1336 = vmatpush1.msra.mxu0 0.0
    %1337 = vmatprep.subr.mxu0 0.0
    %1338 = vmatpush1.msra.mxu0 0.0
    %1339 = vmatprep.subr.mxu0 0.0
    %1340 = vmatpush1.msra.mxu0 0.0
    %1341 = vmatprep.subr.mxu0 0.0
    %1342 = vmatpush1.msra.mxu0 0.0
    %1343 = vmatprep.subr.mxu0 0.0
    %1344 = vmatpush1.msra.mxu0 0.0
    %1345 = vmatprep.subr.mxu0 0.0
    %1346 = vmatpush1.msra.mxu0 0.0
    %1347 = vmatprep.subr.mxu0 0.0
    %1348 = vmatpush1.msra.mxu0 0.0
    %1349 = vmatprep.subr.mxu0 0.0
    %1350 = vmatpush1.msra.mxu0 0.0
    %1351 = vmatprep.subr.mxu0 0.0
    %1352 = vmatpush1.msra.mxu0 0.0
    %1353 = vmatprep.subr.mxu0 0.0
    %1354 = vmatpush1.msra.mxu0 0.0
    %1355 = vmatprep.subr.mxu0 0.0
    %1356 = vmatpush1.msra.mxu0 0.0
    %1357 = vmatprep.subr.mxu0 0.0
    %1358 = vmatpush1.msra.mxu0 0.0
    %1359 = vmatprep.subr.mxu0 0.0
    %1360 = vmatpush1.msra.mxu0 0.0
    %1361 = vmatprep.subr.mxu0 0.0
    %1362 = vmatpush1.msra.mxu0 0.0
    %1363 = vmatprep.subr.mxu0 0.0
    %1364 = vmatpush1.msra.mxu0 0.0
    %1365 = vmatprep.mubr.f32.mxu0 0.0
    %1366 = vmatmul.mubr.f32.gmra.mrb[0].mxu0 %v1299
    %v1367 = vpop.f32.mrb[0].mxu0
    %v1368 = vadd.f32 0.0, %v1367
    %v1369 = vpop.f32.mrb[0].mxu0
    %1370 = vdwg.mxu0
    %1371 = vrot.lane.b32.xlu0 %v133, 112
    %v1372 = vpop.permute.xlu0 %1371
    %v1375 = vsel %vm136, %v838, 0
    %1377 = vmatprep.subr.mxu0 0.0
    %1378 = vmatpush1.msra.mxu0 %v1372
    %1379 = vmatprep.subr.mxu0 0.0
    %1380 = vmatpush1.msra.mxu0 0.0
    %1381 = vmatprep.subr.mxu0 0.0
    %1382 = vmatpush1.msra.mxu0 0.0
    %1383 = vmatprep.subr.mxu0 0.0
    %1384 = vmatpush1.msra.mxu0 0.0
    %1385 = vmatprep.subr.mxu0 0.0
    %1386 = vmatpush1.msra.mxu0 0.0
    %1387 = vmatprep.subr.mxu0 0.0
    %1388 = vmatpush1.msra.mxu0 0.0
    %1389 = vmatprep.subr.mxu0 0.0
    %1390 = vmatpush1.msra.mxu0 0.0
    %1391 = vmatprep.subr.mxu0 0.0
    %1392 = vmatpush1.msra.mxu0 0.0
    %1393 = vmatprep.subr.mxu0 0.0
    %1394 = vmatpush1.msra.mxu0 0.0
    %1395 = vmatprep.subr.mxu0 0.0
    %1396 = vmatpush1.msra.mxu0 0.0
    %1397 = vmatprep.subr.mxu0 0.0
    %1398 = vmatpush1.msra.mxu0 0.0
    %1399 = vmatprep.subr.mxu0 0.0
    %1400 = vmatpush1.msra.mxu0 0.0
    %1401 = vmatprep.subr.mxu0 0.0
    %1402 = vmatpush1.msra.mxu0 0.0
    %1403 = vmatprep.subr.mxu0 0.0
    %1404 = vmatpush1.msra.mxu0 0.0
    %1405 = vmatprep.subr.mxu0 0.0
    %1406 = vmatpush1.msra.mxu0 0.0
    %1407 = vmatprep.subr.mxu0 0.0
    %1408 = vmatpush1.msra.mxu0 0.0
    %1409 = vmatprep.subr.mxu0 0.0
    %1410 = vmatpush1.msra.mxu0 0.0
    %1411 = vmatprep.subr.mxu0 0.0
    %1412 = vmatpush1.msra.mxu0 0.0
    %1413 = vmatprep.subr.mxu0 0.0
    %1414 = vmatpush1.msra.mxu0 0.0
    %1415 = vmatprep.subr.mxu0 0.0
    %1416 = vmatpush1.msra.mxu0 0.0
    %1417 = vmatprep.subr.mxu0 0.0
    %1418 = vmatpush1.msra.mxu0 0.0
    %1419 = vmatprep.subr.mxu0 0.0
    %1420 = vmatpush1.msra.mxu0 0.0
    %1421 = vmatprep.subr.mxu0 0.0
    %1422 = vmatpush1.msra.mxu0 0.0
    %1423 = vmatprep.subr.mxu0 0.0
    %1424 = vmatpush1.msra.mxu0 0.0
    %1425 = vmatprep.subr.mxu0 0.0
    %1426 = vmatpush1.msra.mxu0 0.0
    %1427 = vmatprep.subr.mxu0 0.0
    %1428 = vmatpush1.msra.mxu0 0.0
    %1429 = vmatprep.subr.mxu0 0.0
    %1430 = vmatpush1.msra.mxu0 0.0
    %1431 = vmatprep.subr.mxu0 0.0
    %1432 = vmatpush1.msra.mxu0 0.0
    %1433 = vmatprep.subr.mxu0 0.0
    %1434 = vmatpush1.msra.mxu0 0.0
    %1435 = vmatprep.subr.mxu0 0.0
    %1436 = vmatpush1.msra.mxu0 0.0
    %1437 = vmatprep.subr.mxu0 0.0
    %1438 = vmatpush1.msra.mxu0 0.0
    %1439 = vmatprep.subr.mxu0 0.0
    %1440 = vmatpush1.msra.mxu0 0.0
    %1441 = vmatprep.mubr.f32.mxu0 0.0
    %1442 = vmatmul.mubr.f32.gmra.mrb[0].mxu0 %v1375
    %v1443 = vpop.f32.mrb[0].mxu0
    %v1444 = vadd.f32 0.0, %v1443
    %v1445 = vpop.f32.mrb[0].mxu0
    %1446 = vdwg.mxu0
    %1449 = vrot.lane.b32.xlu0 %v1064, 8
    %v1450 = vpop.permute.xlu0 %1449
    %1451 = vrot.lane.b32.xlu0 %v1140, 8
    %v1452 = vpop.permute.xlu0 %1451
    %1457 = vrot.lane.b32.xlu0 %v1216, 16
    %v1458 = vpop.permute.xlu0 %1457
    %1459 = vrot.lane.b32.xlu0 %v1292, 16
    %v1460 = vpop.permute.xlu0 %1459
    %1465 = vrot.lane.b32.xlu0 %v1368, 24
    %v1466 = vpop.permute.xlu0 %1465
    %1467 = vrot.lane.b32.xlu0 %v1444, 24
    %v1468 = vpop.permute.xlu0 %1467
    %v1471 = vsel %vm136, %v912, %v1450
    %v1472 = vsel %vm136, %v988, %v1452
    %vm1473 = vcmask 130048
    %v1474 = vsel %vm1473, %v1471, %v1458
    %v1475 = vsel %vm1473, %v1472, %v1460
    %vm1476 = vcmask 195584
    %v1477 = vsel %vm1476, %v1474, %v1466
    %v1478 = vsel %vm1476, %v1475, %v1468
    %v1479 = vlaneseq
    %v1480 = vshrl.u32 %v1479, 7
    %v1481 = vsub.s32 1, %v1480
    %v1482 = vrot.slane %v21, %v1481
    %1487 = vrot.lane.b32.xlu0 %v17, 32
    %v1488 = vpop.permute.xlu0 %1487
    %1489 = vrot.lane.b32.xlu0 %v18, 32
    %v1490 = vpop.permute.xlu0 %1489
    %1491 = vrot.lane.b32.xlu0 %v19, 32
    %v1492 = vpop.permute.xlu0 %1491
    %1493 = vrot.lane.b32.xlu0 %v20, 32
    %v1494 = vpop.permute.xlu0 %1493
    %v1500 = vsel %vm38, %v1477, 0
    %v1503 = vsel %vm38, %v1478, 0
    %1505 = vmatprep.subr.mxu0 0.0
    %1506 = vmatpush1.msra.mxu0 %v1488
    %1507 = vmatprep.subr.mxu0 0.0
    %1508 = vmatpush1.msra.mxu0 %v1490
    %1509 = vmatprep.subr.mxu0 0.0
    %1510 = vmatpush1.msra.mxu0 %v1492
    %1511 = vmatprep.subr.mxu0 0.0
    %1512 = vmatpush1.msra.mxu0 %v1494
    %1513 = vmatprep.subr.mxu0 0.0
    %1514 = vmatpush1.msra.mxu0 0.0
    %1515 = vmatprep.subr.mxu0 0.0
    %1516 = vmatpush1.msra.mxu0 0.0
    %1517 = vmatprep.subr.mxu0 0.0
    %1518 = vmatpush1.msra.mxu0 0.0
    %1519 = vmatprep.subr.mxu0 0.0
    %1520 = vmatpush1.msra.mxu0 0.0
    %1521 = vmatprep.subr.mxu0 0.0
    %1522 = vmatpush1.msra.mxu0 0.0
    %1523 = vmatprep.subr.mxu0 0.0
    %1524 = vmatpush1.msra.mxu0 0.0
    %1525 = vmatprep.subr.mxu0 0.0
    %1526 = vmatpush1.msra.mxu0 0.0
    %1527 = vmatprep.subr.mxu0 0.0
    %1528 = vmatpush1.msra.mxu0 0.0
    %1529 = vmatprep.subr.mxu0 0.0
    %1530 = vmatpush1.msra.mxu0 0.0
    %1531 = vmatprep.subr.mxu0 0.0
    %1532 = vmatpush1.msra.mxu0 0.0
    %1533 = vmatprep.subr.mxu0 0.0
    %1534 = vmatpush1.msra.mxu0 0.0
    %1535 = vmatprep.subr.mxu0 0.0
    %1536 = vmatpush1.msra.mxu0 0.0
    %1537 = vmatprep.subr.mxu0 0.0
    %1538 = vmatpush1.msra.mxu0 0.0
    %1539 = vmatprep.subr.mxu0 0.0
    %1540 = vmatpush1.msra.mxu0 0.0
    %1541 = vmatprep.subr.mxu0 0.0
    %1542 = vmatpush1.msra.mxu0 0.0
    %1543 = vmatprep.subr.mxu0 0.0
    %1544 = vmatpush1.msra.mxu0 0.0
    %1545 = vmatprep.subr.mxu0 0.0
    %1546 = vmatpush1.msra.mxu0 0.0
    %1547 = vmatprep.subr.mxu0 0.0
    %1548 = vmatpush1.msra.mxu0 0.0
    %1549 = vmatprep.subr.mxu0 0.0
    %1550 = vmatpush1.msra.mxu0 0.0
    %1551 = vmatprep.subr.mxu0 0.0
    %1552 = vmatpush1.msra.mxu0 0.0
    %1553 = vmatprep.subr.mxu0 0.0
    %1554 = vmatpush1.msra.mxu0 0.0
    %1555 = vmatprep.subr.mxu0 0.0
    %1556 = vmatpush1.msra.mxu0 0.0
    %1557 = vmatprep.subr.mxu0 0.0
    %1558 = vmatpush1.msra.mxu0 0.0
    %1559 = vmatprep.subr.mxu0 0.0
    %1560 = vmatpush1.msra.mxu0 0.0
    %1561 = vmatprep.subr.mxu0 0.0
    %1562 = vmatpush1.msra.mxu0 0.0
    %1563 = vmatprep.subr.mxu0 0.0
    %1564 = vmatpush1.msra.mxu0 0.0
    %1565 = vmatprep.subr.mxu0 0.0
    %1566 = vmatpush1.msra.mxu0 0.0
    %1567 = vmatprep.subr.mxu0 0.0
    %1568 = vmatpush1.msra.mxu0 0.0
    %1569 = vmatprep.mubr.f32.mxu0 0.0
    %1570 = vmatmul.mubr.f32.gmra.mrb[0].mxu0 %v1500
    %v1571 = vpop.f32.mrb[0].mxu0
    %v1572 = vadd.f32 %v1482, %v1571
    %v1573 = vpop.f32.mrb[0].mxu0
    %1574 = vmatprep.mubr.f32.mxu0 0.0
    %1575 = vmatmul.mubr.f32.gmra.mrb[0].mxu0 %v1503
    %v1576 = vpop.f32.mrb[0].mxu0
    %v1577 = vadd.f32 %v1482, %v1576
    %v1578 = vpop.f32.mrb[0].mxu0
    %1579 = vdwg.mxu0
    %v1580 = vadd.f32 %v15, %v1572
    %v1581 = vadd.f32 %v16, %v1577
    %v1582 = vsel %vm38, %v1580, 0.0
    %1583 = vadd.xlane.f32.xlu0 %v1582
    %v1584 = vpop.xlane.xlu0 %1583
    %v1585 = vsel %vm38, %v1581, 0.0
    %1586 = vadd.xlane.f32.xlu0 %v1585
    %v1587 = vpop.xlane.xlu0 %1586
    %v1588 = vrcp.pop 32.0
    %v1589 = vmul.f32 %v1584, %v1588
    %v1590 = vmul.f32 %v1587, %v1588
    %v1591 = vsub.f32 %v1580, %v1589
    %v1592 = vsub.f32 %v1581, %v1590
    %v1593 = vmul.f32 %v1591, %v1591
    %v1594 = vmul.f32 %v1592, %v1592
    %v1595 = vsel %vm38, %v1593, 0.0
    %1596 = vadd.xlane.f32.xlu0 %v1595
    %v1597 = vpop.xlane.xlu0 %1596
    %v1598 = vsel %vm38, %v1594, 0.0
    %1599 = vadd.xlane.f32.xlu0 %v1598
    %v1600 = vpop.xlane.xlu0 %1599
    %v1601 = vmul.f32 %v1597, %v1588
    %v1602 = vmul.f32 %v1600, %v1588
    %v1603 = vadd.f32 %v1601, 1e-05
    %v1604 = vadd.f32 %v1602, 1e-05
    %v1605 = vrsqrt.pop %v1603
    %v1606 = vrsqrt.pop %v1604
    %v1607 = vmul.f32 %v1591, %v1605
    %v1608 = vmul.f32 %v1592, %v1606
    %v1609 = vlaneseq
    %v1610 = vshrl.u32 %v1609, 7
    %v1611 = vsub.s32 2, %v1610
    %v1612 = vrot.slane %v21, %v1611
    %v1613 = vmul.f32 %v1607, %v1612
    %v1614 = vmul.f32 %v1608, %v1612
    %v1615 = vlaneseq
    %v1616 = vshrl.u32 %v1615, 7
    %v1617 = vsub.s32 3, %v1616
    %v1618 = vrot.slane %v21, %v1617
    %v1619 = vadd.f32 %v1613, %v1618
    %v1620 = vadd.f32 %v1614, %v1618
    %v1621 = vlaneseq
    %v1622 = vshrl.u32 %v1621, 7
    %v1623 = vsub.s32 4, %v1622
    %v1624 = vrot.slane %v21, %v1623
    %v1626 = vsel %vm38, %v1619, 0
    %v1629 = vsel %vm38, %v1620, 0
    %1631 = vmatprep.subr.mxu0 0.0
    %1632 = vmatpush1.msra.mxu0 %v22
    %1633 = vmatprep.subr.mxu0 0.0
    %1634 = vmatpush1.msra.mxu0 %v23
    %1635 = vmatprep.subr.mxu0 0.0
    %1636 = vmatpush1.msra.mxu0 %v24
    %1637 = vmatprep.subr.mxu0 0.0
    %1638 = vmatpush1.msra.mxu0 %v25
    %1639 = vmatprep.subr.mxu0 0.0
    %1640 = vmatpush1.msra.mxu0 0.0
    %1641 = vmatprep.subr.mxu0 0.0
    %1642 = vmatpush1.msra.mxu0 0.0
    %1643 = vmatprep.subr.mxu0 0.0
    %1644 = vmatpush1.msra.mxu0 0.0
    %1645 = vmatprep.subr.mxu0 0.0
    %1646 = vmatpush1.msra.mxu0 0.0
    %1647 = vmatprep.subr.mxu0 0.0
    %1648 = vmatpush1.msra.mxu0 0.0
    %1649 = vmatprep.subr.mxu0 0.0
    %1650 = vmatpush1.msra.mxu0 0.0
    %1651 = vmatprep.subr.mxu0 0.0
    %1652 = vmatpush1.msra.mxu0 0.0
    %1653 = vmatprep.subr.mxu0 0.0
    %1654 = vmatpush1.msra.mxu0 0.0
    %1655 = vmatprep.subr.mxu0 0.0
    %1656 = vmatpush1.msra.mxu0 0.0
    %1657 = vmatprep.subr.mxu0 0.0
    %1658 = vmatpush1.msra.mxu0 0.0
    %1659 = vmatprep.subr.mxu0 0.0
    %1660 = vmatpush1.msra.mxu0 0.0
    %1661 = vmatprep.subr.mxu0 0.0
    %1662 = vmatpush1.msra.mxu0 0.0
    %1663 = vmatprep.subr.mxu0 0.0
    %1664 = vmatpush1.msra.mxu0 0.0
    %1665 = vmatprep.subr.mxu0 0.0
    %1666 = vmatpush1.msra.mxu0 0.0
    %1667 = vmatprep.subr.mxu0 0.0
    %1668 = vmatpush1.msra.mxu0 0.0
    %1669 = vmatprep.subr.mxu0 0.0
    %1670 = vmatpush1.msra.mxu0 0.0
    %1671 = vmatprep.subr.mxu0 0.0
    %1672 = vmatpush1.msra.mxu0 0.0
    %1673 = vmatprep.subr.mxu0 0.0
    %1674 = vmatpush1.msra.mxu0 0.0
    %1675 = vmatprep.subr.mxu0 0.0
    %1676 = vmatpush1.msra.mxu0 0.0
    %1677 = vmatprep.subr.mxu0 0.0
    %1678 = vmatpush1.msra.mxu0 0.0
    %1679 = vmatprep.subr.mxu0 0.0
    %1680 = vmatpush1.msra.mxu0 0.0
    %1681 = vmatprep.subr.mxu0 0.0
    %1682 = vmatpush1.msra.mxu0 0.0
    %1683 = vmatprep.subr.mxu0 0.0
    %1684 = vmatpush1.msra.mxu0 0.0
    %1685 = vmatprep.subr.mxu0 0.0
    %1686 = vmatpush1.msra.mxu0 0.0
    %1687 = vmatprep.subr.mxu0 0.0
    %1688 = vmatpush1.msra.mxu0 0.0
    %1689 = vmatprep.subr.mxu0 0.0
    %1690 = vmatpush1.msra.mxu0 0.0
    %1691 = vmatprep.subr.mxu0 0.0
    %1692 = vmatpush1.msra.mxu0 0.0
    %1693 = vmatprep.subr.mxu0 0.0
    %1694 = vmatpush1.msra.mxu0 0.0
    %1695 = vmatprep.mubr.f32.mxu0 0.0
    %1696 = vmatmul.mubr.f32.gmra.mrb[0].mxu0 %v1626
    %v1697 = vpop.f32.mrb[0].mxu0
    %v1698 = vadd.f32 %v1624, %v1697
    %v1699 = vpop.f32.mrb[0].mxu0
    %1700 = vmatprep.mubr.f32.mxu0 0.0
    %1701 = vmatmul.mubr.f32.gmra.mrb[0].mxu0 %v1629
    %v1702 = vpop.f32.mrb[0].mxu0
    %v1703 = vadd.f32 %v1624, %v1702
    %v1704 = vpop.f32.mrb[0].mxu0
    %1705 = vdwg.mxu0
    %v1706 = vmax.f32 %v1698, 0.0
    %v1707 = vmax.f32 %v1703, 0.0
    %v1708 = vlaneseq
    %v1709 = vshrl.u32 %v1708, 7
    %v1710 = vsub.s32 5, %v1709
    %v1711 = vrot.slane %v21, %v1710
    %vm1712 = vcmask 523264
    %v1714 = vsel %vm1712, %v1706, 0
    %v1717 = vsel %vm1712, %v1707, 0
    %1719 = vmatprep.subr.mxu0 0.0
    %1720 = vmatpush1.msra.mxu0 %v26
    %1721 = vmatprep.subr.mxu0 0.0
    %1722 = vmatpush1.msra.mxu0 %v27
    %1723 = vmatprep.subr.mxu0 0.0
    %1724 = vmatpush1.msra.mxu0 %v28
    %1725 = vmatprep.subr.mxu0 0.0
    %1726 = vmatpush1.msra.mxu0 %v29
    %1727 = vmatprep.subr.mxu0 0.0
    %1728 = vmatpush1.msra.mxu0 %v30
    %1729 = vmatprep.subr.mxu0 0.0
    %1730 = vmatpush1.msra.mxu0 %v31
    %1731 = vmatprep.subr.mxu0 0.0
    %1732 = vmatpush1.msra.mxu0 %v32
    %1733 = vmatprep.subr.mxu0 0.0
    %1734 = vmatpush1.msra.mxu0 %v33
    %1735 = vmatprep.subr.mxu0 0.0
    %1736 = vmatpush1.msra.mxu0 0.0
    %1737 = vmatprep.subr.mxu0 0.0
    %1738 = vmatpush1.msra.mxu0 0.0
    %1739 = vmatprep.subr.mxu0 0.0
    %1740 = vmatpush1.msra.mxu0 0.0
    %1741 = vmatprep.subr.mxu0 0.0
    %1742 = vmatpush1.msra.mxu0 0.0
    %1743 = vmatprep.subr.mxu0 0.0
    %1744 = vmatpush1.msra.mxu0 0.0
    %1745 = vmatprep.subr.mxu0 0.0
    %1746 = vmatpush1.msra.mxu0 0.0
    %1747 = vmatprep.subr.mxu0 0.0
    %1748 = vmatpush1.msra.mxu0 0.0
    %1749 = vmatprep.subr.mxu0 0.0
    %1750 = vmatpush1.msra.mxu0 0.0
    %1751 = vmatprep.subr.mxu0 0.0
    %1752 = vmatpush1.msra.mxu0 0.0
    %1753 = vmatprep.subr.mxu0 0.0
    %1754 = vmatpush1.msra.mxu0 0.0
    %1755 = vmatprep.subr.mxu0 0.0
    %1756 = vmatpush1.msra.mxu0 0.0
    %1757 = vmatprep.subr.mxu0 0.0
    %1758 = vmatpush1.msra.mxu0 0.0
    %1759 = vmatprep.subr.mxu0 0.0
    %1760 = vmatpush1.msra.mxu0 0.0
    %1761 = vmatprep.subr.mxu0 0.0
    %1762 = vmatpush1.msra.mxu0 0.0
    %1763 = vmatprep.subr.mxu0 0.0
    %1764 = vmatpush1.msra.mxu0 0.0
    %1765 = vmatprep.subr.mxu0 0.0
    %1766 = vmatpush1.msra.mxu0 0.0
    %1767 = vmatprep.subr.mxu0 0.0
    %1768 = vmatpush1.msra.mxu0 0.0
    %1769 = vmatprep.subr.mxu0 0.0
    %1770 = vmatpush1.msra.mxu0 0.0
    %1771 = vmatprep.subr.mxu0 0.0
    %1772 = vmatpush1.msra.mxu0 0.0
    %1773 = vmatprep.subr.mxu0 0.0
    %1774 = vmatpush1.msra.mxu0 0.0
    %1775 = vmatprep.subr.mxu0 0.0
    %1776 = vmatpush1.msra.mxu0 0.0
    %1777 = vmatprep.subr.mxu0 0.0
    %1778 = vmatpush1.msra.mxu0 0.0
    %1779 = vmatprep.subr.mxu0 0.0
    %1780 = vmatpush1.msra.mxu0 0.0
    %1781 = vmatprep.subr.mxu0 0.0
    %1782 = vmatpush1.msra.mxu0 0.0
    %1783 = vmatprep.mubr.f32.mxu0 0.0
    %1784 = vmatmul.mubr.f32.gmra.mrb[0].mxu0 %v1714
    %v1785 = vpop.f32.mrb[0].mxu0
    %v1786 = vadd.f32 %v1711, %v1785
    %v1787 = vpop.f32.mrb[0].mxu0
    %1788 = vmatprep.mubr.f32.mxu0 0.0
    %1789 = vmatmul.mubr.f32.gmra.mrb[0].mxu0 %v1717
    %v1790 = vpop.f32.mrb[0].mxu0
    %v1791 = vadd.f32 %v1711, %v1790
    %v1792 = vpop.f32.mrb[0].mxu0
    %1793 = vdwg.mxu0
    %v1794 = vadd.f32 %v1619, %v1786
    %v1795 = vadd.f32 %v1620, %v1791
    %v1796 = vsel %vm38, %v1794, 0.0
    %1797 = vadd.xlane.f32.xlu0 %v1796
    %v1798 = vpop.xlane.xlu0 %1797
    %v1799 = vsel %vm38, %v1795, 0.0
    %1800 = vadd.xlane.f32.xlu0 %v1799
    %v1801 = vpop.xlane.xlu0 %1800
    %v1802 = vmul.f32 %v1798, %v1588
    %v1803 = vmul.f32 %v1801, %v1588
    %v1804 = vsub.f32 %v1794, %v1802
    %v1805 = vsub.f32 %v1795, %v1803
    %v1806 = vmul.f32 %v1804, %v1804
    %v1807 = vmul.f32 %v1805, %v1805
    %v1808 = vsel %vm38, %v1806, 0.0
    %1809 = vadd.xlane.f32.xlu0 %v1808
    %v1810 = vpop.xlane.xlu0 %1809
    %v1811 = vsel %vm38, %v1807, 0.0
    %1812 = vadd.xlane.f32.xlu0 %v1811
    %v1813 = vpop.xlane.xlu0 %1812
    %v1814 = vmul.f32 %v1810, %v1588
    %v1815 = vmul.f32 %v1813, %v1588
    %v1816 = vadd.f32 %v1814, 1e-05
    %v1817 = vadd.f32 %v1815, 1e-05
    %v1818 = vrsqrt.pop %v1816
    %v1819 = vrsqrt.pop %v1817
    %v1820 = vmul.f32 %v1804, %v1818
    %v1821 = vmul.f32 %v1805, %v1819
    %v1822 = vlaneseq
    %v1823 = vshrl.u32 %v1822, 7
    %v1824 = vsub.s32 6, %v1823
    %v1825 = vrot.slane %v21, %v1824
    %v1826 = vmul.f32 %v1820, %v1825
    %v1827 = vmul.f32 %v1821, %v1825
    %v1828 = vlaneseq
    %v1829 = vshrl.u32 %v1828, 7
    %v1830 = vsub.s32 7, %v1829
    %v1831 = vrot.slane %v21, %v1830
    %v1832 = vadd.f32 %v1826, %v1831
    %v1833 = vadd.f32 %v1827, %v1831
    %1834 = vst.msk [vmem:[#allocation2] sm:$0xff] %vm38, %v1832
    %1835 = vst.msk [vmem:[#allocation2 + $0x8] sm:$0xff] %vm38, %v1833
    // Predicated region
    $region14: #{tpu_custom_call.1} parent=1 // pred_check
      _
    $region15: #{tpu_custom_call.1} parent=1 // pred_check_branch
      %1837 = sbr.rel (0) target = $region17
    $region16: #{tpu_custom_call.1} parent=1 // pred_region
      %s1839 = ssub.s32 256, 256
      %1840 = vsyncadd [#allocation3], %s1839
      %s1841 = sshll.u32 [#allocation2], 4
      %s1842 = int_to_ptr.vmem [resolvable:$true] %s1841
      %1847 = dma.vmem_to_hbm [thread:$0]  %s1842, 256, %s3, [#allocation3], 128, 128, 8
    $region17: #{tpu_custom_call.1} parent=1 // pred_fallthru
      _
    // Predicated region
    $region18: #{tpu_custom_call.1} parent=1 // pred_check
      _
    $region19: #{tpu_custom_call.1} parent=1 // pred_check_branch
      %1849 = sbr.rel (0) target = $region21
    $region20: #{tpu_custom_call.1} parent=1 // pred_region
      %1850 = dma.done [#allocation3], 256
    $region21: #{tpu_custom_call.1} parent=1 // pred_fallthru
      _
    %1851 = vsyncpa [#allocation3], 1

</llo_original>
